<compile_context>
chip_gen: v6e
topology: v6e:2x2x1
jax: 0.10.0
libtpu: 0.0.40
codegen_flags: <defaults>
</compile_context>

<pallas_src>
import numpy as np
import jax
import jax.numpy as jnp
from jax.experimental import pallas as pl
from jax.experimental.pallas import tpu as pltpu


# ----------------------------------------------------------------------------
# Pallas kernels (channels-first: sublanes = channels, lanes = flattened space)
# ----------------------------------------------------------------------------

def _head_kernel(high_ref, low_ref, wcbr_ref, bnb_ref, wscale_ref,
                 whigh_ref, bhigh_ref, wlow_ref, blow_ref, hk_ref, lo_ref):
    """Fused LR-ASPP head compute for one batch element.

    high: (1, Ch, Sh)   low: (1, Cl, Sl)
    wcbr: (Ci, Ch) [BN scale folded]   bnb: (Ci, 1)   wscale: (Ci, Ch)
    whigh: (K, Ci)  bhigh: (K, 1)      wlow: (K, Cl)  blow: (K, 1)
    hk: (1, K, Sh) = high_classifier(relu(bn(cbr(high))) * sigmoid(scale(high)))
    lo: (1, K, Sl) = low_classifier(low)
    """
    h = high_ref[0]                                                  # (Ch, Sh)
    sh = h.shape[1]
    # AdaptiveAvgPool2d(1) as an MXU matvec (hides under the other matmuls).
    ones_col = jnp.full((sh, 1), 1.0 / sh, dtype=jnp.float32)
    pooled = jnp.dot(h, ones_col, preferred_element_type=jnp.float32)        # (Ch, 1)
    logits = jnp.dot(wscale_ref[...], pooled,
                     preferred_element_type=jnp.float32)                     # (Ci, 1)
    s = 1.0 / (1.0 + jnp.exp(-logits))                                       # sigmoid gate

    y = jnp.dot(wcbr_ref[...], h, preferred_element_type=jnp.float32)        # (Ci, Sh)
    y = jnp.maximum(y + bnb_ref[...], 0.0) * s           # folded BN bias + ReLU + gate
    hk_ref[0] = (jnp.dot(whigh_ref[...], y, preferred_element_type=jnp.float32)
                 + bhigh_ref[...])
    lo_ref[0] = (jnp.dot(wlow_ref[...], low_ref[0], preferred_element_type=jnp.float32)
                 + blow_ref[...])


def _resize_add_kernel(rh_ref, rwT_ref, x_ref, add_ref, o_ref):
    """o[n,k] = Rh @ x[n,k] @ RwT + add[n,k]  for one (batch, class) tile."""
    t = jnp.dot(rh_ref[...], x_ref[0, 0], preferred_element_type=jnp.float32)
    y = jnp.dot(t, rwT_ref[...], preferred_element_type=jnp.float32)
    o_ref[0, 0] = y + add_ref[0, 0]


def _resize_kernel(rh_ref, rwT_ref, x_ref, o_ref):
    """o[n,k,row-tile] = Rh_rows @ x[n,k] @ RwT  (row-tiled full-res resize)."""
    t = jnp.dot(rh_ref[...], x_ref[0, 0], preferred_element_type=jnp.float32)
    o_ref[0, 0] = jnp.dot(t, rwT_ref[...], preferred_element_type=jnp.float32)


# ----------------------------------------------------------------------------
# Wrappers
# ----------------------------------------------------------------------------

def _interp_matrix(out_size: int, in_size: int) -> jnp.ndarray:
    """R (out, in) s.t. y = R @ x matches F.interpolate(mode='bilinear',
    align_corners=False) along one axis.  Rows sum to 1."""
    scale = in_size / out_size
    i = np.arange(out_size, dtype=np.float64)
    src = np.maximum((i + 0.5) * scale - 0.5, 0.0)
    i0 = np.minimum(np.floor(src).astype(np.int64), in_size - 1)
    i1 = np.minimum(i0 + 1, in_size - 1)
    w1 = src - i0
    w0 = 1.0 - w1
    R = np.zeros((out_size, in_size), dtype=np.float64)
    R[np.arange(out_size), i0] += w0
    R[np.arange(out_size), i1] += w1
    return jnp.asarray(R, dtype=jnp.float32)


def _pick_row_tile(rows: int, target: int = 128) -> int:
    """Largest row tile <= target that is a multiple of 8 and divides `rows`."""
    if rows <= target:
        return rows
    for t in range(min(target, rows), 0, -1):
        if rows % t == 0 and t % 8 == 0:
            return t
    return rows


def head_compute(high_f, low_f, wcbr_t, bnb, wscale_t, whigh_t, bhigh, wlow_t, blow):
    """Fused head: returns (hk (N,K,Sh), lo (N,K,Sl)) in CHW-flat layout."""
    N, Ch, Sh = high_f.shape
    _, Cl, Sl = low_f.shape
    Ci = wcbr_t.shape[0]
    K = whigh_t.shape[0]
    return pl.pallas_call(
        _head_kernel,
        out_shape=(jax.ShapeDtypeStruct((N, K, Sh), jnp.float32),
                   jax.ShapeDtypeStruct((N, K, Sl), jnp.float32)),
        grid=(N,),
        in_specs=[pl.BlockSpec((1, Ch, Sh), lambda n: (n, 0, 0)),
                  pl.BlockSpec((1, Cl, Sl), lambda n: (n, 0, 0)),
                  pl.BlockSpec((Ci, Ch), lambda n: (0, 0)),
                  pl.BlockSpec((Ci, 1), lambda n: (0, 0)),
                  pl.BlockSpec((Ci, Ch), lambda n: (0, 0)),
                  pl.BlockSpec((K, Ci), lambda n: (0, 0)),
                  pl.BlockSpec((K, 1), lambda n: (0, 0)),
                  pl.BlockSpec((K, Cl), lambda n: (0, 0)),
                  pl.BlockSpec((K, 1), lambda n: (0, 0))],
        out_specs=(pl.BlockSpec((1, K, Sh), lambda n: (n, 0, 0)),
                   pl.BlockSpec((1, K, Sl), lambda n: (n, 0, 0))),
        compiler_params=pltpu.CompilerParams(dimension_semantics=("parallel",)),
    )(high_f, low_f, wcbr_t, bnb, wscale_t, whigh_t, bhigh, wlow_t, blow)


def resize_add_nchw(x, add):
    """Bilinear-resize x (N,K,Hi,Wi) to add's spatial size and add it (NCHW)."""
    N, K, Hi, Wi = x.shape
    _, _, Ho, Wo = add.shape
    rh = _interp_matrix(Ho, Hi)            # (Ho, Hi)
    rwT = _interp_matrix(Wo, Wi).T         # (Wi, Wo)
    return pl.pallas_call(
        _resize_add_kernel,
        out_shape=jax.ShapeDtypeStruct((N, K, Ho, Wo), jnp.float32),
        grid=(N, K),
        in_specs=[pl.BlockSpec((Ho, Hi), lambda n, k: (0, 0)),
                  pl.BlockSpec((Wi, Wo), lambda n, k: (0, 0)),
                  pl.BlockSpec((1, 1, Hi, Wi), lambda n, k: (n, k, 0, 0)),
                  pl.BlockSpec((1, 1, Ho, Wo), lambda n, k: (n, k, 0, 0))],
        out_specs=pl.BlockSpec((1, 1, Ho, Wo), lambda n, k: (n, k, 0, 0)),
        compiler_params=pltpu.CompilerParams(
            dimension_semantics=("parallel", "parallel")),
    )(rh, rwT, x, add)


def resize_nchw(x, Ho, Wo, row_tile_target=128):
    """Bilinear resize (N,K,Hi,Wi) -> (N,K,Ho,Wo), row-tiled over output rows."""
    N, K, Hi, Wi = x.shape
    rh = _interp_matrix(Ho, Hi)            # (Ho, Hi)
    rwT = _interp_matrix(Wo, Wi).T         # (Wi, Wo)
    th = _pick_row_tile(Ho, row_tile_target)
    return pl.pallas_call(
        _resize_kernel,
        out_shape=jax.ShapeDtypeStruct((N, K, Ho, Wo), jnp.float32),
        grid=(N, K, Ho // th),
        in_specs=[pl.BlockSpec((th, Hi), lambda n, k, r: (r, 0)),
                  pl.BlockSpec((Wi, Wo), lambda n, k, r: (0, 0)),
                  pl.BlockSpec((1, 1, Hi, Wi), lambda n, k, r: (n, k, 0, 0))],
        out_specs=pl.BlockSpec((1, 1, th, Wo), lambda n, k, r: (n, k, r, 0)),
        compiler_params=pltpu.CompilerParams(
            dimension_semantics=("parallel", "parallel", "parallel")),
    )(rh, rwT, x)


# ----------------------------------------------------------------------------
# Model: synthetic backbone (plain-JAX glue) + LRASPP head (Pallas) + upsample
# ----------------------------------------------------------------------------

def synthetic_backbone(x_nchw, params):
    """Deterministic stand-in backbone: strided avg-pool + 1x1 conv + ReLU.
    Returns NCHW (low, high) feature maps at strides 8 and 16."""
    N, C, H, W = x_nchw.shape
    x = jnp.transpose(x_nchw, (0, 2, 3, 1))                       # NHWC for glue

    def pool(v, f):
        return v.reshape(N, H // f, f, W // f, f, C).mean(axis=(2, 4))

    low = jax.nn.relu(pool(x, 8) @ params['wb_low'])              # (N, H/8,  W/8,  Cl)
    high = jax.nn.relu(pool(x, 16) @ params['wb_high'])           # (N, H/16, W/16, Ch)
    return jnp.transpose(low, (0, 3, 1, 2)), jnp.transpose(high, (0, 3, 1, 2))


def lraspp_forward(x_nchw, params):
    N, Cin, Hin, Win = x_nchw.shape
    x = x_nchw.astype(jnp.float32)
    low, high = synthetic_backbone(x, params)                     # NCHW features
    Cl, Hl, Wl = low.shape[1:]
    Ch, Hh, Wh = high.shape[1:]
    Ci = params['w_cbr'].shape[1]
    K = params['w_low'].shape[1]

    # Fold BatchNorm scale into the cbr weight; transpose weights for CHW matmuls.
    wcbr_t = (params['w_cbr'] * params['bn_scale'][None, :]).T    # (Ci, Ch)
    bnb = params['bn_bias'].reshape(Ci, 1)
    wscale_t = params['w_scale'].T                                # (Ci, Ch)
    whigh_t = params['w_high'].T                                  # (K, Ci)
    bhigh = params['b_high'].reshape(K, 1)
    wlow_t = params['w_low'].T                                    # (K, Cl)
    blow = params['b_low'].reshape(K, 1)

    hk_f, lo_f = head_compute(high.reshape(N, Ch, Hh * Wh),
                              low.reshape(N, Cl, Hl * Wl),
                              wcbr_t, bnb, wscale_t, whigh_t, bhigh, wlow_t, blow)
    hk = hk_f.reshape(N, K, Hh, Wh)        # high-classifier output at stride 16
    lo = lo_f.reshape(N, K, Hl, Wl)        # low-classifier output at stride 8

    out_low = resize_add_nchw(hk, lo)                             # (N, K, Hl, Wl)
    return resize_nchw(out_low, Hin, Win)                         # (N, K, Hin, Win) NCHW


# ----------------------------------------------------------------------------
# Pure-JAX reference (original op order, no reordering/fusion) for correctness
# ----------------------------------------------------------------------------

def reference_forward(x_nchw, params):
    N, Cin, Hin, Win = x_nchw.shape
    low, high = synthetic_backbone(x_nchw.astype(jnp.float32), params)
    lowh = jnp.transpose(low, (0, 2, 3, 1))                       # NHWC
    highh = jnp.transpose(high, (0, 2, 3, 1))
    Hl, Wl = lowh.shape[1], lowh.shape[2]

    xc = jnp.einsum('nhwc,cd->nhwd', highh, params['w_cbr'])
    xc = xc * params['bn_scale'] + params['bn_bias']
    xc = jax.nn.relu(xc)
    pooled = highh.mean(axis=(1, 2))
    s = jax.nn.sigmoid(pooled @ params['w_scale'])
    xc = xc * s[:, None, None, :]

    def resize_nhwc(v, Ho, Wo):
        rh = _interp_matrix(Ho, v.shape[1])
        rw = _interp_matrix(Wo, v.shape[2])
        v = jnp.einsum('lh,nhwc->nlwc', rh, v)
        return jnp.einsum('mw,nlwc->nlmc', rw, v)

    xu = resize_nhwc(xc, Hl, Wl)
    out = (jnp.einsum('nhwc,ck->nhwk', lowh, params['w_low']) + params['b_low']
           + jnp.einsum('nhwc,ck->nhwk', xu, params['w_high']) + params['b_high'])
    out = resize_nhwc(out, Hin, Win)
    return jnp.transpose(out, (0, 3, 1, 2))


# ----------------------------------------------------------------------------
# Deterministic parameter init + main
# ----------------------------------------------------------------------------

def init_params(key, cin, low_channels, high_channels, num_classes, inter_channels):
    ks = jax.random.split(key, 10)
    n = jax.random.normal
    gamma = 1.0 + 0.1 * n(ks[6], (inter_channels,), jnp.float32)
    beta = 0.1 * n(ks[7], (inter_channels,), jnp.float32)
    eps = 1e-5  # BatchNorm2d eval mode: running_mean=0, running_var=1
    return {
        'wb_low': 0.2 * n(ks[0], (cin, low_channels), jnp.float32),
        'wb_high': 0.2 * n(ks[1], (cin, high_channels), jnp.float32),
        'w_cbr': 0.2 * n(ks[2], (high_channels, inter_channels), jnp.float32),
        'w_scale': 0.2 * n(ks[3], (high_channels, inter_channels), jnp.float32),
        'w_low': 0.2 * n(ks[4], (low_channels, num_classes), jnp.float32),
        'w_high': 0.2 * n(ks[5], (inter_channels, num_classes), jnp.float32),
        'b_low': 0.1 * n(ks[8], (num_classes,), jnp.float32),
        'b_high': 0.1 * n(ks[9], (num_classes,), jnp.float32),
        'bn_scale': gamma / jnp.sqrt(1.0 + eps),
        'bn_bias': beta,
    }


if __name__ == "__main__":
    # Small shapes: batch=2, Cin=3, 32x32 input; low stride 8 (4x4, 8ch),
    # high stride 16 (2x2, 16ch), num_classes=6, inter_channels=32.
    key = jax.random.PRNGKey(0)
    kx, kp = jax.random.split(key)
    x = jax.random.normal(kx, (2, 3, 32, 32), jnp.float32)
    params = init_params(kp, cin=3, low_channels=8, high_channels=16,
                         num_classes=6, inter_channels=32)

    out = jax.block_until_ready(jax.jit(lraspp_forward)(x, params))
    assert out.shape == (2, 6, 32, 32), out.shape

    ref = jax.block_until_ready(reference_forward(x, params))
    max_err = float(np.max(np.abs(np.asarray(out) - np.asarray(ref))))
    assert np.allclose(np.asarray(out), np.asarray(ref), atol=1e-3, rtol=1e-3), max_err

    print("KERNEL_OK")
</pallas_src>

<mosaic_0001>
module attributes {stable_mosaic.version = 11 : i64} {
  func.func @_resize_add_kernel(%arg0: i32, %arg1: i32, %arg2: memref<4x2xf32, #tpu.memory_space<vmem>>, %arg3: memref<2x4xf32, #tpu.memory_space<vmem>>, %arg4: memref<1x1x2x2xf32, #tpu.memory_space<vmem>>, %arg5: memref<1x1x4x4xf32, #tpu.memory_space<vmem>>, %arg6: memref<1x1x4x4xf32, #tpu.memory_space<vmem>>) attributes {dimension_semantics = [#tpu.dimension_semantics<parallel>, #tpu.dimension_semantics<parallel>], iteration_bounds = array<i64: 2, 6>, scalar_prefetch = 0 : i64, scratch_operands = 0 : i64, tpu.core_type = #tpu.core_type<tc>, window_params = [{pipeline_mode = #tpu.pipeline_mode<synchronous>, transform_indices = @transform_0, window_bounds = array<i64: 4, 2>}, {pipeline_mode = #tpu.pipeline_mode<synchronous>, transform_indices = @transform_1, window_bounds = array<i64: 2, 4>}, {transform_indices = @transform_2, window_bounds = array<i64: 1, 1, 2, 2>}, {transform_indices = @transform_3, window_bounds = array<i64: 1, 1, 4, 4>}, {transform_indices = @transform_4, window_bounds = array<i64: 1, 1, 4, 4>}]} {
    %c0 = arith.constant 0 : index
    %c0_0 = arith.constant 0 : index
    %0 = vector.load %arg2[%c0, %c0_0] : memref<4x2xf32, #tpu.memory_space<vmem>>, vector<4x2xf32>
    %c0_1 = arith.constant 0 : index
    %c0_2 = arith.constant 0 : index
    %c0_3 = arith.constant 0 : index
    %c0_4 = arith.constant 0 : index
    %1 = vector.load %arg4[%c0_1, %c0_2, %c0_3, %c0_4] : memref<1x1x2x2xf32, #tpu.memory_space<vmem>>, vector<1x1x2x2xf32>
    %2 = vector.shape_cast %1 : vector<1x1x2x2xf32> to vector<2x2xf32>
    %cst = arith.constant dense<0.000000e+00> : vector<4x2xf32>
    %3 = tpu.matmul %0, %2, %cst {dimension_numbers = #tpu.dot_dimension_numbers<[1], [0], [0], [1], [0, 0, 1, 1], [], []>} : vector<4x2xf32>, vector<2x2xf32>, vector<4x2xf32> -> vector<4x2xf32>
    %c0_5 = arith.constant 0 : index
    %c0_6 = arith.constant 0 : index
    %4 = vector.load %arg3[%c0_5, %c0_6] : memref<2x4xf32, #tpu.memory_space<vmem>>, vector<2x4xf32>
    %cst_7 = arith.constant dense<0.000000e+00> : vector<4x4xf32>
    %5 = tpu.matmul %3, %4, %cst_7 {dimension_numbers = #tpu.dot_dimension_numbers<[1], [0], [0], [1], [0, 0, 1, 1], [], []>} : vector<4x2xf32>, vector<2x4xf32>, vector<4x4xf32> -> vector<4x4xf32>
    %c0_8 = arith.constant 0 : index
    %c0_9 = arith.constant 0 : index
    %c0_10 = arith.constant 0 : index
    %c0_11 = arith.constant 0 : index
    %6 = vector.load %arg5[%c0_8, %c0_9, %c0_10, %c0_11] : memref<1x1x4x4xf32, #tpu.memory_space<vmem>>, vector<1x1x4x4xf32>
    %7 = vector.shape_cast %6 : vector<1x1x4x4xf32> to vector<4x4xf32>
    %8 = arith.addf %5, %7 : vector<4x4xf32>
    %c0_12 = arith.constant 0 : index
    %c0_13 = arith.constant 0 : index
    %c0_14 = arith.constant 0 : index
    %c0_15 = arith.constant 0 : index
    %9 = vector.load %arg6[%c0_12, %c0_13, %c0_14, %c0_15] : memref<1x1x4x4xf32, #tpu.memory_space<vmem>>, vector<1x1x4x4xf32>
    %10 = vector.shape_cast %9 : vector<1x1x4x4xf32> to vector<4x4xf32>
    %11 = vector.shape_cast %8 : vector<4x4xf32> to vector<1x1x4x4xf32>
    tpu.vector_store %arg6[%c0_12, %c0_13, %c0_14, %c0_15], %11 {strides = array<i32>} : memref<1x1x4x4xf32, #tpu.memory_space<vmem>>, vector<1x1x4x4xf32>,
    return
  }
  func.func @transform_0(%arg0: i32, %arg1: i32) -> (i32, i32) {
    %c0_i32 = arith.constant 0 : i32
    %c0_i32_0 = arith.constant 0 : i32
    %c0_i32_1 = arith.constant 0 : i32
    return %c0_i32, %c0_i32_0 : i32, i32
  }
  func.func @transform_1(%arg0: i32, %arg1: i32) -> (i32, i32) {
    %c0_i32 = arith.constant 0 : i32
    %c0_i32_0 = arith.constant 0 : i32
    %c0_i32_1 = arith.constant 0 : i32
    return %c0_i32, %c0_i32_0 : i32, i32
  }
  func.func @transform_2(%arg0: i32, %arg1: i32) -> (i32, i32, i32, i32) {
    %c0_i32 = arith.constant 0 : i32
    %c0_i32_0 = arith.constant 0 : i32
    %c0_i32_1 = arith.constant 0 : i32
    return %arg0, %arg1, %c0_i32, %c0_i32_0 : i32, i32, i32, i32
  }
  func.func @transform_3(%arg0: i32, %arg1: i32) -> (i32, i32, i32, i32) {
    %c0_i32 = arith.constant 0 : i32
    %c0_i32_0 = arith.constant 0 : i32
    %c0_i32_1 = arith.constant 0 : i32
    return %arg0, %arg1, %c0_i32, %c0_i32_0 : i32, i32, i32, i32
  }
  func.func @transform_4(%arg0: i32, %arg1: i32) -> (i32, i32, i32, i32) {
    %c0_i32 = arith.constant 0 : i32
    %c0_i32_0 = arith.constant 0 : i32
    %c0_i32_1 = arith.constant 0 : i32
    return %arg0, %arg1, %c0_i32, %c0_i32_0 : i32, i32, i32, i32
  }
}

module attributes {stable_mosaic.version = 11 : i64} {
  func.func @_resize_kernel(%arg0: i32, %arg1: i32, %arg2: i32, %arg3: memref<32x4xf32, #tpu.memory_space<vmem>>, %arg4: memref<4x32xf32, #tpu.memory_space<vmem>>, %arg5: memref<1x1x4x4xf32, #tpu.memory_space<vmem>>, %arg6: memref<1x1x32x32xf32, #tpu.memory_space<vmem>>) attributes {dimension_semantics = [#tpu.dimension_semantics<parallel>, #tpu.dimension_semantics<parallel>, #tpu.dimension_semantics<parallel>], iteration_bounds = array<i64: 2, 6, 1>, scalar_prefetch = 0 : i64, scratch_operands = 0 : i64, tpu.core_type = #tpu.core_type<tc>, window_params = [{transform_indices = @transform_0, window_bounds = array<i64: 32, 4>}, {pipeline_mode = #tpu.pipeline_mode<synchronous>, transform_indices = @transform_1, window_bounds = array<i64: 4, 32>}, {transform_indices = @transform_2, window_bounds = array<i64: 1, 1, 4, 4>}, {transform_indices = @transform_3, window_bounds = array<i64: 1, 1, 32, 32>}]} {
    %c0 = arith.constant 0 : index
    %c0_0 = arith.constant 0 : index
    %0 = vector.load %arg3[%c0, %c0_0] : memref<32x4xf32, #tpu.memory_space<vmem>>, vector<32x4xf32>
    %c0_1 = arith.constant 0 : index
    %c0_2 = arith.constant 0 : index
    %c0_3 = arith.constant 0 : index
    %c0_4 = arith.constant 0 : index
    %1 = vector.load %arg5[%c0_1, %c0_2, %c0_3, %c0_4] : memref<1x1x4x4xf32, #tpu.memory_space<vmem>>, vector<1x1x4x4xf32>
    %2 = vector.shape_cast %1 : vector<1x1x4x4xf32> to vector<4x4xf32>
    %cst = arith.constant dense<0.000000e+00> : vector<32x4xf32>
    %3 = tpu.matmul %0, %2, %cst {dimension_numbers = #tpu.dot_dimension_numbers<[1], [0], [0], [1], [0, 0, 1, 1], [], []>} : vector<32x4xf32>, vector<4x4xf32>, vector<32x4xf32> -> vector<32x4xf32>
    %c0_5 = arith.constant 0 : index
    %c0_6 = arith.constant 0 : index
    %4 = vector.load %arg4[%c0_5, %c0_6] : memref<4x32xf32, #tpu.memory_space<vmem>>, vector<4x32xf32>
    %cst_7 = arith.constant dense<0.000000e+00> : vector<32x32xf32>
    %5 = tpu.matmul %3, %4, %cst_7 {dimension_numbers = #tpu.dot_dimension_numbers<[1], [0], [0], [1], [0, 0, 1, 1], [], []>} : vector<32x4xf32>, vector<4x32xf32>, vector<32x32xf32> -> vector<32x32xf32>
    %c0_8 = arith.constant 0 : index
    %c0_9 = arith.constant 0 : index
    %c0_10 = arith.constant 0 : index
    %c0_11 = arith.constant 0 : index
    %6 = vector.load %arg6[%c0_8, %c0_9, %c0_10, %c0_11] : memref<1x1x32x32xf32, #tpu.memory_space<vmem>>, vector<1x1x32x32xf32>
    %7 = vector.shape_cast %6 : vector<1x1x32x32xf32> to vector<32x32xf32>
    %8 = vector.shape_cast %5 : vector<32x32xf32> to vector<1x1x32x32xf32>
    tpu.vector_store %arg6[%c0_8, %c0_9, %c0_10, %c0_11], %8 {strides = array<i32>} : memref<1x1x32x32xf32, #tpu.memory_space<vmem>>, vector<1x1x32x32xf32>,
    return
  }
  func.func @transform_0(%arg0: i32, %arg1: i32, %arg2: i32) -> (i32, i32) {
    %c0_i32 = arith.constant 0 : i32
    %c0_i32_0 = arith.constant 0 : i32
    return %arg2, %c0_i32 : i32, i32
  }
  func.func @transform_1(%arg0: i32, %arg1: i32, %arg2: i32) -> (i32, i32) {
    %c0_i32 = arith.constant 0 : i32
    %c0_i32_0 = arith.constant 0 : i32
    %c0_i32_1 = arith.constant 0 : i32
    return %c0_i32, %c0_i32_0 : i32, i32
  }
  func.func @transform_2(%arg0: i32, %arg1: i32, %arg2: i32) -> (i32, i32, i32, i32) {
    %c0_i32 = arith.constant 0 : i32
    %c0_i32_0 = arith.constant 0 : i32
    %c0_i32_1 = arith.constant 0 : i32
    return %arg0, %arg1, %c0_i32, %c0_i32_0 : i32, i32, i32, i32
  }
  func.func @transform_3(%arg0: i32, %arg1: i32, %arg2: i32) -> (i32, i32, i32, i32) {
    %c0_i32 = arith.constant 0 : i32
    %c0_i32_0 = arith.constant 0 : i32
    return %arg0, %arg1, %arg2, %c0_i32 : i32, i32, i32, i32
  }
}

module attributes {stable_mosaic.version = 11 : i64} {
  func.func @_head_kernel(%arg0: i32, %arg1: memref<1x16x4xf32, #tpu.memory_space<vmem>>, %arg2: memref<1x8x16xf32, #tpu.memory_space<vmem>>, %arg3: memref<32x16xf32, #tpu.memory_space<vmem>>, %arg4: memref<32x1xf32, #tpu.memory_space<vmem>>, %arg5: memref<32x16xf32, #tpu.memory_space<vmem>>, %arg6: memref<6x32xf32, #tpu.memory_space<vmem>>, %arg7: memref<6x1xf32, #tpu.memory_space<vmem>>, %arg8: memref<6x8xf32, #tpu.memory_space<vmem>>, %arg9: memref<6x1xf32, #tpu.memory_space<vmem>>, %arg10: memref<1x6x4xf32, #tpu.memory_space<vmem>>, %arg11: memref<1x6x16xf32, #tpu.memory_space<vmem>>) attributes {dimension_semantics = [#tpu.dimension_semantics<parallel>], iteration_bounds = array<i64: 2>, scalar_prefetch = 0 : i64, scratch_operands = 0 : i64, tpu.core_type = #tpu.core_type<tc>, window_params = [{transform_indices = @transform_0, window_bounds = array<i64: 1, 16, 4>}, {transform_indices = @transform_1, window_bounds = array<i64: 1, 8, 16>}, {pipeline_mode = #tpu.pipeline_mode<synchronous>, transform_indices = @transform_2, window_bounds = array<i64: 32, 16>}, {pipeline_mode = #tpu.pipeline_mode<synchronous>, transform_indices = @transform_3, window_bounds = array<i64: 32, 1>}, {pipeline_mode = #tpu.pipeline_mode<synchronous>, transform_indices = @transform_4, window_bounds = array<i64: 32, 16>}, {pipeline_mode = #tpu.pipeline_mode<synchronous>, transform_indices = @transform_5, window_bounds = array<i64: 6, 32>}, {pipeline_mode = #tpu.pipeline_mode<synchronous>, transform_indices = @transform_6, window_bounds = array<i64: 6, 1>}, {pipeline_mode = #tpu.pipeline_mode<synchronous>, transform_indices = @transform_7, window_bounds = array<i64: 6, 8>}, {pipeline_mode = #tpu.pipeline_mode<synchronous>, transform_indices = @transform_8, window_bounds = array<i64: 6, 1>}, {transform_indices = @transform_9, window_bounds = array<i64: 1, 6, 4>}, {transform_indices = @transform_10, window_bounds = array<i64: 1, 6, 16>}]} {
    %c0 = arith.constant 0 : index
    %c0_0 = arith.constant 0 : index
    %c0_1 = arith.constant 0 : index
    %0 = vector.load %arg1[%c0, %c0_0, %c0_1] : memref<1x16x4xf32, #tpu.memory_space<vmem>>, vector<1x16x4xf32>
    %1 = vector.shape_cast %0 : vector<1x16x4xf32> to vector<16x4xf32>
    %cst = arith.constant 2.500000e-01 : f32
    %2 = vector.broadcast %cst : f32 to vector<4x1xf32>
    %cst_2 = arith.constant dense<0.000000e+00> : vector<16x1xf32>
    %3 = tpu.matmul %1, %2, %cst_2 {dimension_numbers = #tpu.dot_dimension_numbers<[1], [0], [0], [1], [0, 0, 1, 1], [], []>} : vector<16x4xf32>, vector<4x1xf32>, vector<16x1xf32> -> vector<16x1xf32>
    %c0_3 = arith.constant 0 : index
    %c0_4 = arith.constant 0 : index
    %4 = vector.load %arg5[%c0_3, %c0_4] : memref<32x16xf32, #tpu.memory_space<vmem>>, vector<32x16xf32>
    %cst_5 = arith.constant dense<0.000000e+00> : vector<32x1xf32>
    %5 = tpu.matmul %4, %3, %cst_5 {dimension_numbers = #tpu.dot_dimension_numbers<[1], [0], [0], [1], [0, 0, 1, 1], [], []>} : vector<32x16xf32>, vector<16x1xf32>, vector<32x1xf32> -> vector<32x1xf32>
    %cst_6 = arith.constant 0.000000e+00 : f32
    %6 = vector.broadcast %cst_6 : f32 to vector<32x1xf32>
    %7 = arith.subf %6, %5 : vector<32x1xf32>
    %8 = math.exp %7 : vector<32x1xf32>
    %cst_7 = arith.constant 1.000000e+00 : f32
    %9 = vector.broadcast %cst_7 : f32 to vector<32x1xf32>
    %10 = arith.addf %9, %8 : vector<32x1xf32>
    %cst_8 = arith.constant 1.000000e+00 : f32
    %11 = vector.broadcast %cst_8 : f32 to vector<32x1xf32>
    %12 = arith.divf %11, %10 : vector<32x1xf32>
    %c0_9 = arith.constant 0 : index
    %c0_10 = arith.constant 0 : index
    %13 = vector.load %arg3[%c0_9, %c0_10] : memref<32x16xf32, #tpu.memory_space<vmem>>, vector<32x16xf32>
    %cst_11 = arith.constant dense<0.000000e+00> : vector<32x4xf32>
    %14 = tpu.matmul %13, %1, %cst_11 {dimension_numbers = #tpu.dot_dimension_numbers<[1], [0], [0], [1], [0, 0, 1, 1], [], []>} : vector<32x16xf32>, vector<16x4xf32>, vector<32x4xf32> -> vector<32x4xf32>
    %c0_12 = arith.constant 0 : index
    %c0_13 = arith.constant 0 : index
    %15 = vector.load %arg4[%c0_12, %c0_13] : memref<32x1xf32, #tpu.memory_space<vmem>>, vector<32x1xf32>
    %16 = vector.broadcast %15 : vector<32x1xf32> to vector<32x4xf32>
    %17 = arith.addf %14, %16 : vector<32x4xf32>
    %cst_14 = arith.constant 0.000000e+00 : f32
    %18 = vector.broadcast %cst_14 : f32 to vector<32x4xf32>
    %19 = arith.maximumf %17, %18 : vector<32x4xf32>
    %20 = vector.broadcast %12 : vector<32x1xf32> to vector<32x4xf32>
    %21 = arith.mulf %19, %20 : vector<32x4xf32>
    %c0_15 = arith.constant 0 : index
    %c0_16 = arith.constant 0 : index
    %22 = vector.load %arg6[%c0_15, %c0_16] : memref<6x32xf32, #tpu.memory_space<vmem>>, vector<6x32xf32>
    %cst_17 = arith.constant dense<0.000000e+00> : vector<6x4xf32>
    %23 = tpu.matmul %22, %21, %cst_17 {dimension_numbers = #tpu.dot_dimension_numbers<[1], [0], [0], [1], [0, 0, 1, 1], [], []>} : vector<6x32xf32>, vector<32x4xf32>, vector<6x4xf32> -> vector<6x4xf32>
    %c0_18 = arith.constant 0 : index
    %c0_19 = arith.constant 0 : index
    %24 = vector.load %arg7[%c0_18, %c0_19] : memref<6x1xf32, #tpu.memory_space<vmem>>, vector<6x1xf32>
    %25 = vector.broadcast %24 : vector<6x1xf32> to vector<6x4xf32>
    %26 = arith.addf %23, %25 : vector<6x4xf32>
    %c0_20 = arith.constant 0 : index
    %c0_21 = arith.constant 0 : index
    %c0_22 = arith.constant 0 : index
    %27 = vector.load %arg10[%c0_20, %c0_21, %c0_22] : memref<1x6x4xf32, #tpu.memory_space<vmem>>, vector<1x6x4xf32>
    %28 = vector.shape_cast %27 : vector<1x6x4xf32> to vector<6x4xf32>
    %29 = vector.shape_cast %26 : vector<6x4xf32> to vector<1x6x4xf32>
    tpu.vector_store %arg10[%c0_20, %c0_21, %c0_22], %29 {strides = array<i32>} : memref<1x6x4xf32, #tpu.memory_space<vmem>>, vector<1x6x4xf32>,
    %c0_23 = arith.constant 0 : index
    %c0_24 = arith.constant 0 : index
    %30 = vector.load %arg8[%c0_23, %c0_24] : memref<6x8xf32, #tpu.memory_space<vmem>>, vector<6x8xf32>
    %c0_25 = arith.constant 0 : index
    %c0_26 = arith.constant 0 : index
    %c0_27 = arith.constant 0 : index
    %31 = vector.load %arg2[%c0_25, %c0_26, %c0_27] : memref<1x8x16xf32, #tpu.memory_space<vmem>>, vector<1x8x16xf32>
    %32 = vector.shape_cast %31 : vector<1x8x16xf32> to vector<8x16xf32>
    %cst_28 = arith.constant dense<0.000000e+00> : vector<6x16xf32>
    %33 = tpu.matmul %30, %32, %cst_28 {dimension_numbers = #tpu.dot_dimension_numbers<[1], [0], [0], [1], [0, 0, 1, 1], [], []>} : vector<6x8xf32>, vector<8x16xf32>, vector<6x16xf32> -> vector<6x16xf32>
    %c0_29 = arith.constant 0 : index
    %c0_30 = arith.constant 0 : index
    %34 = vector.load %arg9[%c0_29, %c0_30] : memref<6x1xf32, #tpu.memory_space<vmem>>, vector<6x1xf32>
    %35 = vector.broadcast %34 : vector<6x1xf32> to vector<6x16xf32>
    %36 = arith.addf %33, %35 : vector<6x16xf32>
    %c0_31 = arith.constant 0 : index
    %c0_32 = arith.constant 0 : index
    %c0_33 = arith.constant 0 : index
    %37 = vector.load %arg11[%c0_31, %c0_32, %c0_33] : memref<1x6x16xf32, #tpu.memory_space<vmem>>, vector<1x6x16xf32>
    %38 = vector.shape_cast %37 : vector<1x6x16xf32> to vector<6x16xf32>
    %39 = vector.shape_cast %36 : vector<6x16xf32> to vector<1x6x16xf32>
    tpu.vector_store %arg11[%c0_31, %c0_32, %c0_33], %39 {strides = array<i32>} : memref<1x6x16xf32, #tpu.memory_space<vmem>>, vector<1x6x16xf32>,
    return
  }
  func.func @transform_0(%arg0: i32) -> (i32, i32, i32) {
    %c0_i32 = arith.constant 0 : i32
    %c0_i32_0 = arith.constant 0 : i32
    %c0_i32_1 = arith.constant 0 : i32
    return %arg0, %c0_i32, %c0_i32_0 : i32, i32, i32
  }
  func.func @transform_1(%arg0: i32) -> (i32, i32, i32) {
    %c0_i32 = arith.constant 0 : i32
    %c0_i32_0 = arith.constant 0 : i32
    %c0_i32_1 = arith.constant 0 : i32
    return %arg0, %c0_i32, %c0_i32_0 : i32, i32, i32
  }
  func.func @transform_2(%arg0: i32) -> (i32, i32) {
    %c0_i32 = arith.constant 0 : i32
    %c0_i32_0 = arith.constant 0 : i32
    %c0_i32_1 = arith.constant 0 : i32
    return %c0_i32, %c0_i32_0 : i32, i32
  }
  func.func @transform_3(%arg0: i32) -> (i32, i32) {
    %c0_i32 = arith.constant 0 : i32
    %c0_i32_0 = arith.constant 0 : i32
    %c0_i32_1 = arith.constant 0 : i32
    return %c0_i32, %c0_i32_0 : i32, i32
  }
  func.func @transform_4(%arg0: i32) -> (i32, i32) {
    %c0_i32 = arith.constant 0 : i32
    %c0_i32_0 = arith.constant 0 : i32
    %c0_i32_1 = arith.constant 0 : i32
    return %c0_i32, %c0_i32_0 : i32, i32
  }
  func.func @transform_5(%arg0: i32) -> (i32, i32) {
    %c0_i32 = arith.constant 0 : i32
    %c0_i32_0 = arith.constant 0 : i32
    %c0_i32_1 = arith.constant 0 : i32
    return %c0_i32, %c0_i32_0 : i32, i32
  }
  func.func @transform_6(%arg0: i32) -> (i32, i32) {
    %c0_i32 = arith.constant 0 : i32
    %c0_i32_0 = arith.constant 0 : i32
    %c0_i32_1 = arith.constant 0 : i32
    return %c0_i32, %c0_i32_0 : i32, i32
  }
  func.func @transform_7(%arg0: i32) -> (i32, i32) {
    %c0_i32 = arith.constant 0 : i32
    %c0_i32_0 = arith.constant 0 : i32
    %c0_i32_1 = arith.constant 0 : i32
    return %c0_i32, %c0_i32_0 : i32, i32
  }
  func.func @transform_8(%arg0: i32) -> (i32, i32) {
    %c0_i32 = arith.constant 0 : i32
    %c0_i32_0 = arith.constant 0 : i32
    %c0_i32_1 = arith.constant 0 : i32
    return %c0_i32, %c0_i32_0 : i32, i32
  }
  func.func @transform_9(%arg0: i32) -> (i32, i32, i32) {
    %c0_i32 = arith.constant 0 : i32
    %c0_i32_0 = arith.constant 0 : i32
    %c0_i32_1 = arith.constant 0 : i32
    return %arg0, %c0_i32, %c0_i32_0 : i32, i32, i32
  }
  func.func @transform_10(%arg0: i32) -> (i32, i32, i32) {
    %c0_i32 = arith.constant 0 : i32
    %c0_i32_0 = arith.constant 0 : i32
    %c0_i32_1 = arith.constant 0 : i32
    return %arg0, %c0_i32, %c0_i32_0 : i32, i32, i32
  }
}

</mosaic_0001>

<llo_original>
// kernel: lraspp_forward.5
$region0: #{lraspp_forward.5}
  #allocation0 [shape = 'u32[]', space=smem, size = 0x4, offset = 0x4, fixed_abs, tag = 'smem constant byte address 0x4 - core index']
  #allocation1 [shape = 'u32[144,128]{1,0:T(1,128)}', space=vmem, size = 0x12000, scoped, tag = 'internal scratch']
  %s0 = inlined_call_operand.vmem [shape: f32[32,4], index: 0, kind: input, shape index: {}]
  %s1 = inlined_call_operand.vmem [shape: f32[4,32], index: 1, kind: input, shape index: {}]
  %s2 = inlined_call_operand.vmem [shape: f32[2,6,4,4], index: 2, kind: input, shape index: {}]
  %s3 = inlined_call_operand.hbm [shape: f32[2,6,32,32], index: 3, kind: output, shape index: {}]
  %s4 = sld [smem:[#allocation0]]
  $region45: #{lraspp_forward.5} parent=0
    _
  %s6 = ssub.s32 1, %s4
  %s7 = scalar_select 0, %s6, %s4
  $region1: #{lraspp_forward.5} parent=0
    #allocation2 [shape = 'u8[32768]{0}', space=vmem, size = 0x8000, scoped, tag = 'output window, operand 0']
    #allocation3 [shape = 's32[2]{0}', space=sflag, size = 0x8, scoped, tag = 'scoped memory for lraspp_forward.5']
    %8 = vsyncpa [#allocation3], 0
    %s9 = scalar_lea.sflag [#allocation3], 1
    %10 = vsyncpa %s9, 0
    loop: start=0, step=1, limit=14
    $region2: #{lraspp_forward.5} parent=1 // loop_pre_header
      _
    $region3: #{lraspp_forward.5} parent=1 // loop_header
      %s12 = sphi 0, %s16
      %p13 = scmp.ge.s32.totalorder %s12, 14
      %s19 = sphi 0, %s38
      %s20 = sphi 0, %s34
      %s21 = sphi 0, %s30
      %s22 = sphi 0, %s19
      %s23 = sphi 0, %s20
      %s24 = sphi 0, %s21
      %s25 = sphi 0, %s22
      %s26 = sphi 0, %s23
      %s27 = sphi 0, %s24
      %s41 = sphi 0, %s43
      %s44 = sphi 0, %s41
      %s45 = sphi 0, %s44
      %s61 = sphi 0, %s45
      %s65 = sphi 0, %s65
      %s67 = sphi 0, %s65
      %s68 = sphi 0, %s67
      %s82 = sphi 0, %s68
      %s90 = sphi 0, %s92
      %s93 = sphi 0, %s90
      %s94 = sphi 0, %s93
      %s110 = sphi 0, %s94
      %s120 = sphi 0, %s122
      %s123 = sphi 0, %s120
      %s124 = sphi 0, %s123
      %s140 = sphi 0, %s124
    $region4: #{lraspp_forward.5} parent=1 // loop_header_branch
      %15 = sbr.rel (%p13) target = $region8
    $region5: #{lraspp_forward.5} parent=1 // loop_body
      %s17 = ssub.s32 %s12, 1
      %s18 = ssub.s32 %s12, 2
      %s28 = sadd.s32 1, %s21
      %p29 = scmp.ge.s32.totalorder %s28, 1
      %s30 = scalar_select %p29, 0, %s28
      %s31 = sadd.s32 1, %s20
      %s32 = scalar_select %p29, %s31, %s20
      %p33 = scmp.ge.s32.totalorder %s32, 6
      %s34 = scalar_select %p33, 0, %s32
      %s35 = sadd.s32 1, %s19
      %s36 = scalar_select %p33, %s35, %s19
      %p37 = scmp.ge.s32.totalorder %s36, 2
      %s38 = scalar_select %p37, 0, %s36
      %s39 = ssub.s32 %s21, %s30
      %p40 = scmp.eq.s32.totalorder %s39, 0
      %s42 = sadd.s32 %s41, 1
      %s43 = scalar_select %p40, %s41, %s42
      %p46 = pneg %p40
      %p47 = scmp.eq.s32.totalorder %s12, 11
      %p48 = por %p46, %p47
      %p49 = scmp.ne.s32.totalorder %s41, %s44
      %p50 = scmp.eq.s32.totalorder %s12, 0
      %p51 = por %p49, %p50
      %p52 = scmp.ne.s32.totalorder %s41, %s44
      %p53 = scmp.eq.s32.totalorder %s17, 11
      %p54 = por %p52, %p53
      %p55 = scmp.ne.s32.totalorder %s44, %s45
      %p56 = scmp.eq.s32.totalorder %s17, 0
      %p57 = por %p55, %p56
      %p58 = scmp.ne.s32.totalorder %s44, %s45
      %p59 = scmp.eq.s32.totalorder %s18, 11
      %p60 = por %p58, %p59
      %p62 = scmp.ne.s32.totalorder %s45, %s61
      %p63 = scmp.eq.s32.totalorder %s18, 0
      %p64 = por %p62, %p63
      %s66 = sadd.s32 %s65, 1
      %p69 = scmp.eq.s32.totalorder %s12, 11
      %p70 = scmp.ne.s32.totalorder %s65, %s67
      %p71 = scmp.eq.s32.totalorder %s12, 0
      %p72 = por %p70, %p71
      %p73 = scmp.ne.s32.totalorder %s65, %s67
      %p74 = scmp.eq.s32.totalorder %s17, 11
      %p75 = por %p73, %p74
      %p76 = scmp.ne.s32.totalorder %s67, %s68
      %p77 = scmp.eq.s32.totalorder %s17, 0
      %p78 = por %p76, %p77
      %p79 = scmp.ne.s32.totalorder %s67, %s68
      %p80 = scmp.eq.s32.totalorder %s18, 11
      %p81 = por %p79, %p80
      %p83 = scmp.ne.s32.totalorder %s68, %s82
      %p84 = scmp.eq.s32.totalorder %s18, 0
      %p85 = por %p83, %p84
      %s86 = ssub.s32 %s19, %s38
      %s87 = ssub.s32 %s20, %s34
      %s88 = sor.u32 %s86, %s87
      %p89 = scmp.eq.s32.totalorder %s88, 0
      %s91 = sadd.s32 %s90, 1
      %s92 = scalar_select %p89, %s90, %s91
      %p95 = pneg %p89
      %p96 = scmp.eq.s32.totalorder %s12, 11
      %p97 = por %p95, %p96
      %p98 = scmp.ne.s32.totalorder %s90, %s93
      %p99 = scmp.eq.s32.totalorder %s12, 0
      %p100 = por %p98, %p99
      %p101 = scmp.ne.s32.totalorder %s90, %s93
      %p102 = scmp.eq.s32.totalorder %s17, 11
      %p103 = por %p101, %p102
      %p104 = scmp.ne.s32.totalorder %s93, %s94
      %p105 = scmp.eq.s32.totalorder %s17, 0
      %p106 = por %p104, %p105
      %p107 = scmp.ne.s32.totalorder %s93, %s94
      %p108 = scmp.eq.s32.totalorder %s18, 11
      %p109 = por %p107, %p108
      %p111 = scmp.ne.s32.totalorder %s94, %s110
      %p112 = scmp.eq.s32.totalorder %s18, 0
      %p113 = por %p111, %p112
      %s114 = ssub.s32 %s19, %s38
      %s115 = ssub.s32 %s20, %s34
      %s116 = sor.u32 %s114, %s115
      %s117 = ssub.s32 %s21, %s30
      %s118 = sor.u32 %s116, %s117
      %p119 = scmp.eq.s32.totalorder %s118, 0
      %s121 = sadd.s32 %s120, 1
      %s122 = scalar_select %p119, %s120, %s121
      %p125 = pneg %p119
      %p126 = scmp.eq.s32.totalorder %s12, 11
      %p127 = por %p125, %p126
      %p128 = scmp.ne.s32.totalorder %s120, %s123
      %p129 = scmp.eq.s32.totalorder %s12, 0
      %p130 = por %p128, %p129
      %p131 = scmp.ne.s32.totalorder %s120, %s123
      %p132 = scmp.eq.s32.totalorder %s17, 11
      %p133 = por %p131, %p132
      %p134 = scmp.ne.s32.totalorder %s123, %s124
      %p135 = scmp.eq.s32.totalorder %s17, 0
      %p136 = por %p134, %p135
      %p137 = scmp.ne.s32.totalorder %s123, %s124
      %p138 = scmp.eq.s32.totalorder %s18, 11
      %p139 = por %p137, %p138
      %p141 = scmp.ne.s32.totalorder %s124, %s140
      %p142 = scmp.eq.s32.totalorder %s18, 0
      %p143 = por %p141, %p142
      %p144 = scmp.le.s32.totalorder 1, %s12
      %p145 = scmp.lt.s32.totalorder %s12, 13
      %p146 = pnand %p144, %p145
      %p147 = pneg %p146
      // Predicated region
      $region9: #{lraspp_forward.5} parent=5 // pred_check
        _
      $region10: #{lraspp_forward.5} parent=5 // pred_check_branch
        %149 = sbr.rel (%p146) target = $region12
      $region11: #{lraspp_forward.5} parent=5 // pred_region
        %s150 = ssub.s32 %s12, 1
        // Predicated region
        $region13: #{lraspp_forward.5} parent=11 // pred_check
          %p151 = pneg %p57
        $region14: #{lraspp_forward.5} parent=11 // pred_check_branch
          %153 = sbr.rel (%p151) target = $region16
        $region15: #{lraspp_forward.5} parent=11 // pred_region
          %s154 = smul.u32 4, %s24
          %p155 = scmp.lt.s32.totalorder %s154, 3
          %s156 = scalar_select %p155, %s154, 3
          %s157 = smul.addr %s156, 8
          %s158 = scalar_lea.vmem %s0, %s157
          %s159 = smul.u32 4, %s24
        $region16: #{lraspp_forward.5} parent=11 // pred_fallthru
          _
        // Predicated region
        $region17: #{lraspp_forward.5} parent=11 // pred_check
          %p160 = pneg %p78
        $region18: #{lraspp_forward.5} parent=11 // pred_check_branch
          %162 = sbr.rel (%p160) target = $region20
        $region19: #{lraspp_forward.5} parent=11 // pred_region
          _
        $region20: #{lraspp_forward.5} parent=11 // pred_fallthru
          _
      $region12: #{lraspp_forward.5} parent=5 // pred_fallthru
        _
      %p163 = scmp.lt.s32.totalorder %s12, 12
      // Predicated region
      $region21: #{lraspp_forward.5} parent=5 // pred_check
        %p164 = pneg %p163
      $region22: #{lraspp_forward.5} parent=5 // pred_check_branch
        %166 = sbr.rel (%p164) target = $region24
      $region23: #{lraspp_forward.5} parent=5 // pred_region
        // Predicated region
        $region25: #{lraspp_forward.5} parent=23 // pred_check
          %p167 = pneg %p100
        $region26: #{lraspp_forward.5} parent=23 // pred_check_branch
          %169 = sbr.rel (%p167) target = $region28
        $region27: #{lraspp_forward.5} parent=23 // pred_region
          %p170 = scmp.lt.s32.totalorder %s19, 1
          %s171 = scalar_select %p170, %s19, 1
          %p172 = scmp.lt.s32.totalorder %s20, 5
          %s173 = scalar_select %p172, %s20, 5
          %s174 = smul.addr %s171, 6
          %s175 = sadd.s32 %s173, %s174
          %s176 = smul.addr %s175, 4
          %s177 = scalar_lea.vmem %s2, %s176
        $region28: #{lraspp_forward.5} parent=23 // pred_fallthru
          _
      $region24: #{lraspp_forward.5} parent=5 // pred_fallthru
        _
      %p178 = scmp.le.s32.totalorder 1, %s12
      %p179 = scmp.lt.s32.totalorder %s12, 13
      %p180 = pnand %p178, %p179
      %p181 = pneg %p180
      // Predicated region
      $region29: #{lraspp_forward.5} parent=5 // pred_check
        _
      $region30: #{lraspp_forward.5} parent=5 // pred_check_branch
        %183 = sbr.rel (%p180) target = $region32
      $region31: #{lraspp_forward.5} parent=5 // pred_region
        %s184 = ssub.s32 %s12, 1
        %s185 = smul.u32 4, %s24
        %p186 = scmp.lt.s32.totalorder %s185, 3
        %s187 = scalar_select %p186, %s185, 3
        %s188 = smul.addr %s187, 8
        %s189 = scalar_lea.vmem %s0, %s188
        %p190 = pneg %p57
        %p191 = pneg %p54
        %p192 = pneg %p78
        %p193 = pneg %p75
        %p194 = scmp.lt.s32.totalorder %s22, 1
        %s195 = scalar_select %p194, %s22, 1
        %p196 = scmp.lt.s32.totalorder %s23, 5
        %s197 = scalar_select %p196, %s23, 5
        %s198 = smul.addr %s195, 6
        %s199 = sadd.s32 %s197, %s198
        %s200 = smul.addr %s199, 4
        %s201 = scalar_lea.vmem %s2, %s200
        %p202 = pneg %p106
        %p203 = pneg %p103
        %p204 = pneg %p136
        %p205 = pneg %p133
        %s206 = sand.u32 %s123, 1
        %s207 = scalar_lea.sflag [#allocation3], %s206
        %s208 = sand.u32 %s123, 1
        %s209 = smul.addr %s208, 32
        %s210 = scalar_lea.vmem [#allocation2], %s209
        %s211 = smul.u32 4, %s24
        %p212 = scmp.lt.s32.totalorder %s211, 3
        %s213 = scalar_select %p212, %s211, 3
        %s214 = smul.addr %s213, 8
        %s215 = scalar_lea.vmem %s0, %s214
        %s216 = smul.u32 4, %s24
        %p217 = scmp.lt.s32.totalorder %s22, 1
        %s218 = scalar_select %p217, %s22, 1
        %p219 = scmp.lt.s32.totalorder %s23, 5
        %s220 = scalar_select %p219, %s23, 5
        %s221 = smul.addr %s218, 6
        %s222 = sadd.s32 %s220, %s221
        %s223 = smul.addr %s222, 4
        %s224 = scalar_lea.vmem %s2, %s223
        %s225 = smul.u32 4, %s24
        %v226 = vld [vmem:[%s215] sm:$0xff]
        %v227 = vld [vmem:[%s215 + $0x8] sm:$0xff]
        %v228 = vld [vmem:[%s215 + $0x10] sm:$0xff]
        %v229 = vld [vmem:[%s215 + $0x18] sm:$0xff]
        %v230 = vld [vmem:[%s224] sm:$0xf]
        %vm231 = vcmask 31744
        %v233 = vsel %vm231, %v226, 0
        %v236 = vsel %vm231, %v227, 0
        %v239 = vsel %vm231, %v228, 0
        %v242 = vsel %vm231, %v229, 0
        %vm244 = vcmask 1043456
        %v246 = vsel %vm244, %v230, 0
        %248 = vmatprep.subr.mxu0 0.0
        %249 = vmatpush1.msra.mxu0 0.0
        %250 = vmatprep.subr.mxu0 0.0
        %251 = vmatpush1.msra.mxu0 0.0
        %252 = vmatprep.subr.mxu0 0.0
        %253 = vmatpush1.msra.mxu0 0.0
        %254 = vmatprep.subr.mxu0 0.0
        %255 = vmatpush1.msra.mxu0 0.0
        %256 = vmatprep.subr.mxu0 0.0
        %257 = vmatpush1.msra.mxu0 0.0
        %258 = vmatprep.subr.mxu0 0.0
        %259 = vmatpush1.msra.mxu0 0.0
        %260 = vmatprep.subr.mxu0 0.0
        %261 = vmatpush1.msra.mxu0 0.0
        %262 = vmatprep.subr.mxu0 0.0
        %263 = vmatpush1.msra.mxu0 0.0
        %264 = vmatprep.subr.mxu0 0.0
        %265 = vmatpush1.msra.mxu0 0.0
        %266 = vmatprep.subr.mxu0 0.0
        %267 = vmatpush1.msra.mxu0 0.0
        %268 = vmatprep.subr.mxu0 0.0
        %269 = vmatpush1.msra.mxu0 0.0
        %270 = vmatprep.subr.mxu0 0.0
        %271 = vmatpush1.msra.mxu0 0.0
        %272 = vmatprep.subr.mxu0 0.0
        %273 = vmatpush1.msra.mxu0 0.0
        %274 = vmatprep.subr.mxu0 0.0
        %275 = vmatpush1.msra.mxu0 0.0
        %276 = vmatprep.subr.mxu0 0.0
        %277 = vmatpush1.msra.mxu0 0.0
        %278 = vmatprep.subr.mxu0 0.0
        %279 = vmatpush1.msra.mxu0 %v246
        %280 = vmatprep.subr.mxu0 0.0
        %281 = vmatpush2.msra.mxu0 0.0
        %282 = vmatprep.subr.mxu0 0.0
        %283 = vmatpush2.msra.mxu0 0.0
        %284 = vmatprep.subr.mxu0 0.0
        %285 = vmatpush2.msra.mxu0 0.0
        %286 = vmatprep.subr.mxu0 0.0
        %287 = vmatpush2.msra.mxu0 0.0
        %288 = vmatprep.subr.mxu0 0.0
        %289 = vmatpush2.msra.mxu0 0.0
        %290 = vmatprep.subr.mxu0 0.0
        %291 = vmatpush2.msra.mxu0 0.0
        %292 = vmatprep.subr.mxu0 0.0
        %293 = vmatpush2.msra.mxu0 0.0
        %294 = vmatprep.subr.mxu0 0.0
        %295 = vmatpush2.msra.mxu0 0.0
        %296 = vmatprep.subr.mxu0 0.0
        %297 = vmatpush2.msra.mxu0 0.0
        %298 = vmatprep.subr.mxu0 0.0
        %299 = vmatpush2.msra.mxu0 0.0
        %300 = vmatprep.subr.mxu0 0.0
        %301 = vmatpush2.msra.mxu0 0.0
        %302 = vmatprep.subr.mxu0 0.0
        %303 = vmatpush2.msra.mxu0 0.0
        %304 = vmatprep.subr.mxu0 0.0
        %305 = vmatpush2.msra.mxu0 0.0
        %306 = vmatprep.subr.mxu0 0.0
        %307 = vmatpush2.msra.mxu0 0.0
        %308 = vmatprep.subr.mxu0 0.0
        %309 = vmatpush2.msra.mxu0 0.0
        %310 = vmatprep.subr.mxu0 0.0
        %311 = vmatpush2.msra.mxu0 0.0
        %312 = vmatprep.mubr.f32.mxu0 0.0
        %313 = vmatmul.mubr.f32.gmra.mxu0 %v233
        %v314 = vpop.f32.mrf.mxu0
        %v315 = vadd.f32 0.0, %v314
        %v316 = vpop.f32.mrf.mxu0
        %317 = vmatprep.mubr.f32.mxu0 0.0
        %318 = vmatmul.mubr.f32.gmra.mxu0 %v236
        %v319 = vpop.f32.mrf.mxu0
        %v320 = vadd.f32 0.0, %v319
        %v321 = vpop.f32.mrf.mxu0
        %322 = vmatprep.mubr.f32.mxu0 0.0
        %323 = vmatmul.mubr.f32.gmra.mxu0 %v239
        %v324 = vpop.f32.mrf.mxu0
        %v325 = vadd.f32 0.0, %v324
        %v326 = vpop.f32.mrf.mxu0
        %327 = vmatprep.mubr.f32.mxu0 0.0
        %328 = vmatmul.mubr.f32.gmra.mxu0 %v242
        %v329 = vpop.f32.mrf.mxu0
        %v330 = vadd.f32 0.0, %v329
        %v331 = vpop.f32.mrf.mxu0
        %332 = vdwg.mxu0
        %v333 = vld [vmem:[%s1] sm:$0xf]
        %v335 = vsel %vm231, %v315, 0
        %v338 = vsel %vm231, %v320, 0
        %v341 = vsel %vm231, %v325, 0
        %v344 = vsel %vm231, %v330, 0
        %v347 = vsel %vm244, %v333, 0
        %349 = vmatprep.subr.mxu0 0.0
        %350 = vmatpush1.msra.mxu0 0.0
        %351 = vmatprep.subr.mxu0 0.0
        %352 = vmatpush1.msra.mxu0 0.0
        %353 = vmatprep.subr.mxu0 0.0
        %354 = vmatpush1.msra.mxu0 0.0
        %355 = vmatprep.subr.mxu0 0.0
        %356 = vmatpush1.msra.mxu0 0.0
        %357 = vmatprep.subr.mxu0 0.0
        %358 = vmatpush1.msra.mxu0 0.0
        %359 = vmatprep.subr.mxu0 0.0
        %360 = vmatpush1.msra.mxu0 0.0
        %361 = vmatprep.subr.mxu0 0.0
        %362 = vmatpush1.msra.mxu0 0.0
        %363 = vmatprep.subr.mxu0 0.0
        %364 = vmatpush1.msra.mxu0 0.0
        %365 = vmatprep.subr.mxu0 0.0
        %366 = vmatpush1.msra.mxu0 0.0
        %367 = vmatprep.subr.mxu0 0.0
        %368 = vmatpush1.msra.mxu0 0.0
        %369 = vmatprep.subr.mxu0 0.0
        %370 = vmatpush1.msra.mxu0 0.0
        %371 = vmatprep.subr.mxu0 0.0
        %372 = vmatpush1.msra.mxu0 0.0
        %373 = vmatprep.subr.mxu0 0.0
        %374 = vmatpush1.msra.mxu0 0.0
        %375 = vmatprep.subr.mxu0 0.0
        %376 = vmatpush1.msra.mxu0 0.0
        %377 = vmatprep.subr.mxu0 0.0
        %378 = vmatpush1.msra.mxu0 0.0
        %379 = vmatprep.subr.mxu0 0.0
        %380 = vmatpush1.msra.mxu0 %v347
        %381 = vmatprep.subr.mxu0 0.0
        %382 = vmatpush2.msra.mxu0 0.0
        %383 = vmatprep.subr.mxu0 0.0
        %384 = vmatpush2.msra.mxu0 0.0
        %385 = vmatprep.subr.mxu0 0.0
        %386 = vmatpush2.msra.mxu0 0.0
        %387 = vmatprep.subr.mxu0 0.0
        %388 = vmatpush2.msra.mxu0 0.0
        %389 = vmatprep.subr.mxu0 0.0
        %390 = vmatpush2.msra.mxu0 0.0
        %391 = vmatprep.subr.mxu0 0.0
        %392 = vmatpush2.msra.mxu0 0.0
        %393 = vmatprep.subr.mxu0 0.0
        %394 = vmatpush2.msra.mxu0 0.0
        %395 = vmatprep.subr.mxu0 0.0
        %396 = vmatpush2.msra.mxu0 0.0
        %397 = vmatprep.subr.mxu0 0.0
        %398 = vmatpush2.msra.mxu0 0.0
        %399 = vmatprep.subr.mxu0 0.0
        %400 = vmatpush2.msra.mxu0 0.0
        %401 = vmatprep.subr.mxu0 0.0
        %402 = vmatpush2.msra.mxu0 0.0
        %403 = vmatprep.subr.mxu0 0.0
        %404 = vmatpush2.msra.mxu0 0.0
        %405 = vmatprep.subr.mxu0 0.0
        %406 = vmatpush2.msra.mxu0 0.0
        %407 = vmatprep.subr.mxu0 0.0
        %408 = vmatpush2.msra.mxu0 0.0
        %409 = vmatprep.subr.mxu0 0.0
        %410 = vmatpush2.msra.mxu0 0.0
        %411 = vmatprep.subr.mxu0 0.0
        %412 = vmatpush2.msra.mxu0 0.0
        %413 = vmatprep.mubr.f32.mxu0 0.0
        %414 = vmatmul.mubr.f32.gmra.mxu0 %v335
        %v415 = vpop.f32.mrf.mxu0
        %v416 = vadd.f32 0.0, %v415
        %v417 = vpop.f32.mrf.mxu0
        %418 = vmatprep.mubr.f32.mxu0 0.0
        %419 = vmatmul.mubr.f32.gmra.mxu0 %v338
        %v420 = vpop.f32.mrf.mxu0
        %v421 = vadd.f32 0.0, %v420
        %v422 = vpop.f32.mrf.mxu0
        %423 = vmatprep.mubr.f32.mxu0 0.0
        %424 = vmatmul.mubr.f32.gmra.mxu0 %v341
        %v425 = vpop.f32.mrf.mxu0
        %v426 = vadd.f32 0.0, %v425
        %v427 = vpop.f32.mrf.mxu0
        %428 = vmatprep.mubr.f32.mxu0 0.0
        %429 = vmatmul.mubr.f32.gmra.mxu0 %v344
        %v430 = vpop.f32.mrf.mxu0
        %v431 = vadd.f32 0.0, %v430
        %v432 = vpop.f32.mrf.mxu0
        %433 = vdwg.mxu0
        %vm434 = vcmask 261120
        %435 = vst.msk [vmem:[%s210] sm:$0xff] %vm434, %v416
        %436 = vst.msk [vmem:[%s210 + $0x8] sm:$0xff] %vm434, %v421
        %437 = vst.msk [vmem:[%s210 + $0x10] sm:$0xff] %vm434, %v426
        %438 = vst.msk [vmem:[%s210 + $0x18] sm:$0xff] %vm434, %v431
        %s439 = sand.u32 %s123, 1
        %s440 = scalar_lea.sflag [#allocation3], %s439
        %s441 = sand.u32 %s123, 1
        %s442 = smul.addr %s441, 32
        %s443 = scalar_lea.vmem [#allocation2], %s442
        // Predicated region
        $region33: #{lraspp_forward.5} parent=31 // pred_check
          %p444 = pneg %p133
        $region34: #{lraspp_forward.5} parent=31 // pred_check_branch
          %446 = sbr.rel (%p444) target = $region36
        $region35: #{lraspp_forward.5} parent=31 // pred_region
          %s447 = smul.u32 4, %s24
          %s449 = ssub.s32 512, 512
          %450 = vsyncadd %s440, %s449
          %s451 = smul.addr %s23, 4
          %s452 = sadd.s32 %s447, %s451
          %s453 = smul.addr %s22, 24
          %s454 = sadd.s32 %s452, %s453
          %s455 = smul.addr %s454, 128
          %s456 = scalar_lea.hbm %s3, %s455
          %s457 = sshll.u32 %s443, 4
          %s458 = int_to_ptr.vmem [resolvable:$true] %s457
          %463 = dma.vmem_to_hbm [thread:$0]  %s458, 512, %s456, %s440, 128, 128, 8
        $region36: #{lraspp_forward.5} parent=31 // pred_fallthru
          _
      $region32: #{lraspp_forward.5} parent=5 // pred_fallthru
        _
      %p464 = scmp.le.s32.totalorder 2, %s12
      // Predicated region
      $region37: #{lraspp_forward.5} parent=5 // pred_check
        %p465 = pneg %p464
      $region38: #{lraspp_forward.5} parent=5 // pred_check_branch
        %467 = sbr.rel (%p465) target = $region40
      $region39: #{lraspp_forward.5} parent=5 // pred_region
        %s468 = ssub.s32 %s12, 2
        // Predicated region
        $region41: #{lraspp_forward.5} parent=39 // pred_check
          %p469 = pneg %p139
        $region42: #{lraspp_forward.5} parent=39 // pred_check_branch
          %471 = sbr.rel (%p469) target = $region44
        $region43: #{lraspp_forward.5} parent=39 // pred_region
          %s472 = sand.u32 %s124, 1
          %s473 = scalar_lea.sflag [#allocation3], %s472
          %s474 = sand.u32 %s124, 1
          %s475 = smul.addr %s474, 32
          %s476 = scalar_lea.vmem [#allocation2], %s475
          %477 = dma.done %s473, 512
        $region44: #{lraspp_forward.5} parent=39 // pred_fallthru
          _
      $region40: #{lraspp_forward.5} parent=5 // pred_fallthru
        _
    $region6: #{lraspp_forward.5} parent=1 // loop_footer
      %s16 = sadd.s32 1, %s12
    $region7: #{lraspp_forward.5} parent=1 // loop_footer_branch
      %11 = sbr.rel target = $region3
    $region8: #{lraspp_forward.5} parent=1 // loop_exit
      _
    %478 = vsyncpa [#allocation3], 1
    %s479 = scalar_lea.sflag [#allocation3], 1
    %480 = vsyncpa %s479, 1

// kernel: lraspp_forward.4
$region0: #{lraspp_forward.4}
  #allocation0 [shape = 'u32[]', space=smem, size = 0x4, offset = 0x4, fixed_abs, tag = 'smem constant byte address 0x4 - core index']
  #allocation1 [shape = 'u32[144,128]{1,0:T(1,128)}', space=vmem, size = 0x12000, scoped, tag = 'internal scratch']
  %s0 = inlined_call_operand.vmem [shape: f32[4,2], index: 0, kind: input, shape index: {}]
  %s1 = inlined_call_operand.vmem [shape: f32[2,4], index: 1, kind: input, shape index: {}]
  %s2 = inlined_call_operand.vmem [shape: f32[2,6,2,2], index: 2, kind: input, shape index: {}]
  %s3 = inlined_call_operand.vmem [shape: f32[2,6,4,4], index: 3, kind: input, shape index: {}]
  %s4 = inlined_call_operand.vmem [shape: f32[2,6,4,4], index: 4, kind: output, shape index: {}]
  %s5 = sld [smem:[#allocation0]]
  $region49: #{lraspp_forward.4} parent=0
    _
  %s7 = ssub.s32 1, %s5
  %s8 = scalar_select 0, %s7, %s5
  loop: start=0, step=1, limit=14
  $region2: #{lraspp_forward.4} parent=0 // loop_pre_header
    _
  $region3: #{lraspp_forward.4} parent=0 // loop_header
    %s10 = sphi 0, %s14
    %p11 = scmp.ge.s32.totalorder %s10, 14
    %s17 = sphi 0, %s29
    %s18 = sphi 0, %s25
    %s19 = sphi 0, %s17
    %s20 = sphi 0, %s18
    %s21 = sphi 0, %s19
    %s22 = sphi 0, %s20
    %s30 = sphi 0, %s30
    %s32 = sphi 0, %s30
    %s33 = sphi 0, %s32
    %s47 = sphi 0, %s33
    %s51 = sphi 0, %s51
    %s53 = sphi 0, %s51
    %s54 = sphi 0, %s53
    %s68 = sphi 0, %s54
    %s76 = sphi 0, %s78
    %s79 = sphi 0, %s76
    %s80 = sphi 0, %s79
    %s96 = sphi 0, %s80
    %s104 = sphi 0, %s106
    %s107 = sphi 0, %s104
    %s108 = sphi 0, %s107
    %s124 = sphi 0, %s108
    %s132 = sphi 0, %s134
    %s135 = sphi 0, %s132
    %s136 = sphi 0, %s135
    %s152 = sphi 0, %s136
  $region4: #{lraspp_forward.4} parent=0 // loop_header_branch
    %13 = sbr.rel (%p11) target = $region8
  $region5: #{lraspp_forward.4} parent=0 // loop_body
    %s15 = ssub.s32 %s10, 1
    %s16 = ssub.s32 %s10, 2
    %s23 = sadd.s32 1, %s18
    %p24 = scmp.ge.s32.totalorder %s23, 6
    %s25 = scalar_select %p24, 0, %s23
    %s26 = sadd.s32 1, %s17
    %s27 = scalar_select %p24, %s26, %s17
    %p28 = scmp.ge.s32.totalorder %s27, 2
    %s29 = scalar_select %p28, 0, %s27
    %s31 = sadd.s32 %s30, 1
    %p34 = scmp.eq.s32.totalorder %s10, 11
    %p35 = scmp.ne.s32.totalorder %s30, %s32
    %p36 = scmp.eq.s32.totalorder %s10, 0
    %p37 = por %p35, %p36
    %p38 = scmp.ne.s32.totalorder %s30, %s32
    %p39 = scmp.eq.s32.totalorder %s15, 11
    %p40 = por %p38, %p39
    %p41 = scmp.ne.s32.totalorder %s32, %s33
    %p42 = scmp.eq.s32.totalorder %s15, 0
    %p43 = por %p41, %p42
    %p44 = scmp.ne.s32.totalorder %s32, %s33
    %p45 = scmp.eq.s32.totalorder %s16, 11
    %p46 = por %p44, %p45
    %p48 = scmp.ne.s32.totalorder %s33, %s47
    %p49 = scmp.eq.s32.totalorder %s16, 0
    %p50 = por %p48, %p49
    %s52 = sadd.s32 %s51, 1
    %p55 = scmp.eq.s32.totalorder %s10, 11
    %p56 = scmp.ne.s32.totalorder %s51, %s53
    %p57 = scmp.eq.s32.totalorder %s10, 0
    %p58 = por %p56, %p57
    %p59 = scmp.ne.s32.totalorder %s51, %s53
    %p60 = scmp.eq.s32.totalorder %s15, 11
    %p61 = por %p59, %p60
    %p62 = scmp.ne.s32.totalorder %s53, %s54
    %p63 = scmp.eq.s32.totalorder %s15, 0
    %p64 = por %p62, %p63
    %p65 = scmp.ne.s32.totalorder %s53, %s54
    %p66 = scmp.eq.s32.totalorder %s16, 11
    %p67 = por %p65, %p66
    %p69 = scmp.ne.s32.totalorder %s54, %s68
    %p70 = scmp.eq.s32.totalorder %s16, 0
    %p71 = por %p69, %p70
    %s72 = ssub.s32 %s17, %s29
    %s73 = ssub.s32 %s18, %s25
    %s74 = sor.u32 %s72, %s73
    %p75 = scmp.eq.s32.totalorder %s74, 0
    %s77 = sadd.s32 %s76, 1
    %s78 = scalar_select %p75, %s76, %s77
    %p81 = pneg %p75
    %p82 = scmp.eq.s32.totalorder %s10, 11
    %p83 = por %p81, %p82
    %p84 = scmp.ne.s32.totalorder %s76, %s79
    %p85 = scmp.eq.s32.totalorder %s10, 0
    %p86 = por %p84, %p85
    %p87 = scmp.ne.s32.totalorder %s76, %s79
    %p88 = scmp.eq.s32.totalorder %s15, 11
    %p89 = por %p87, %p88
    %p90 = scmp.ne.s32.totalorder %s79, %s80
    %p91 = scmp.eq.s32.totalorder %s15, 0
    %p92 = por %p90, %p91
    %p93 = scmp.ne.s32.totalorder %s79, %s80
    %p94 = scmp.eq.s32.totalorder %s16, 11
    %p95 = por %p93, %p94
    %p97 = scmp.ne.s32.totalorder %s80, %s96
    %p98 = scmp.eq.s32.totalorder %s16, 0
    %p99 = por %p97, %p98
    %s100 = ssub.s32 %s17, %s29
    %s101 = ssub.s32 %s18, %s25
    %s102 = sor.u32 %s100, %s101
    %p103 = scmp.eq.s32.totalorder %s102, 0
    %s105 = sadd.s32 %s104, 1
    %s106 = scalar_select %p103, %s104, %s105
    %p109 = pneg %p103
    %p110 = scmp.eq.s32.totalorder %s10, 11
    %p111 = por %p109, %p110
    %p112 = scmp.ne.s32.totalorder %s104, %s107
    %p113 = scmp.eq.s32.totalorder %s10, 0
    %p114 = por %p112, %p113
    %p115 = scmp.ne.s32.totalorder %s104, %s107
    %p116 = scmp.eq.s32.totalorder %s15, 11
    %p117 = por %p115, %p116
    %p118 = scmp.ne.s32.totalorder %s107, %s108
    %p119 = scmp.eq.s32.totalorder %s15, 0
    %p120 = por %p118, %p119
    %p121 = scmp.ne.s32.totalorder %s107, %s108
    %p122 = scmp.eq.s32.totalorder %s16, 11
    %p123 = por %p121, %p122
    %p125 = scmp.ne.s32.totalorder %s108, %s124
    %p126 = scmp.eq.s32.totalorder %s16, 0
    %p127 = por %p125, %p126
    %s128 = ssub.s32 %s17, %s29
    %s129 = ssub.s32 %s18, %s25
    %s130 = sor.u32 %s128, %s129
    %p131 = scmp.eq.s32.totalorder %s130, 0
    %s133 = sadd.s32 %s132, 1
    %s134 = scalar_select %p131, %s132, %s133
    %p137 = pneg %p131
    %p138 = scmp.eq.s32.totalorder %s10, 11
    %p139 = por %p137, %p138
    %p140 = scmp.ne.s32.totalorder %s132, %s135
    %p141 = scmp.eq.s32.totalorder %s10, 0
    %p142 = por %p140, %p141
    %p143 = scmp.ne.s32.totalorder %s132, %s135
    %p144 = scmp.eq.s32.totalorder %s15, 11
    %p145 = por %p143, %p144
    %p146 = scmp.ne.s32.totalorder %s135, %s136
    %p147 = scmp.eq.s32.totalorder %s15, 0
    %p148 = por %p146, %p147
    %p149 = scmp.ne.s32.totalorder %s135, %s136
    %p150 = scmp.eq.s32.totalorder %s16, 11
    %p151 = por %p149, %p150
    %p153 = scmp.ne.s32.totalorder %s136, %s152
    %p154 = scmp.eq.s32.totalorder %s16, 0
    %p155 = por %p153, %p154
    %p156 = scmp.le.s32.totalorder 1, %s10
    %p157 = scmp.lt.s32.totalorder %s10, 13
    %p158 = pnand %p156, %p157
    %p159 = pneg %p158
    // Predicated region
    $region9: #{lraspp_forward.4} parent=5 // pred_check
      _
    $region10: #{lraspp_forward.4} parent=5 // pred_check_branch
      %161 = sbr.rel (%p158) target = $region12
    $region11: #{lraspp_forward.4} parent=5 // pred_region
      %s162 = ssub.s32 %s10, 1
      // Predicated region
      $region13: #{lraspp_forward.4} parent=11 // pred_check
        %p163 = pneg %p43
      $region14: #{lraspp_forward.4} parent=11 // pred_check_branch
        %165 = sbr.rel (%p163) target = $region16
      $region15: #{lraspp_forward.4} parent=11 // pred_region
        _
      $region16: #{lraspp_forward.4} parent=11 // pred_fallthru
        _
      // Predicated region
      $region17: #{lraspp_forward.4} parent=11 // pred_check
        %p166 = pneg %p64
      $region18: #{lraspp_forward.4} parent=11 // pred_check_branch
        %168 = sbr.rel (%p166) target = $region20
      $region19: #{lraspp_forward.4} parent=11 // pred_region
        _
      $region20: #{lraspp_forward.4} parent=11 // pred_fallthru
        _
    $region12: #{lraspp_forward.4} parent=5 // pred_fallthru
      _
    %p169 = scmp.lt.s32.totalorder %s10, 12
    // Predicated region
    $region21: #{lraspp_forward.4} parent=5 // pred_check
      %p170 = pneg %p169
    $region22: #{lraspp_forward.4} parent=5 // pred_check_branch
      %172 = sbr.rel (%p170) target = $region24
    $region23: #{lraspp_forward.4} parent=5 // pred_region
      // Predicated region
      $region25: #{lraspp_forward.4} parent=23 // pred_check
        %p173 = pneg %p86
      $region26: #{lraspp_forward.4} parent=23 // pred_check_branch
        %175 = sbr.rel (%p173) target = $region28
      $region27: #{lraspp_forward.4} parent=23 // pred_region
        %p176 = scmp.lt.s32.totalorder %s17, 1
        %s177 = scalar_select %p176, %s17, 1
        %p178 = scmp.lt.s32.totalorder %s18, 5
        %s179 = scalar_select %p178, %s18, 5
        %s180 = smul.addr %s177, 6
        %s181 = sadd.s32 %s179, %s180
        %s182 = smul.addr %s181, 2
        %s183 = scalar_lea.vmem %s2, %s182
      $region28: #{lraspp_forward.4} parent=23 // pred_fallthru
        _
      // Predicated region
      $region29: #{lraspp_forward.4} parent=23 // pred_check
        %p184 = pneg %p114
      $region30: #{lraspp_forward.4} parent=23 // pred_check_branch
        %186 = sbr.rel (%p184) target = $region32
      $region31: #{lraspp_forward.4} parent=23 // pred_region
        %p187 = scmp.lt.s32.totalorder %s17, 1
        %s188 = scalar_select %p187, %s17, 1
        %p189 = scmp.lt.s32.totalorder %s18, 5
        %s190 = scalar_select %p189, %s18, 5
        %s191 = smul.addr %s188, 6
        %s192 = sadd.s32 %s190, %s191
        %s193 = smul.addr %s192, 4
        %s194 = scalar_lea.vmem %s3, %s193
      $region32: #{lraspp_forward.4} parent=23 // pred_fallthru
        _
    $region24: #{lraspp_forward.4} parent=5 // pred_fallthru
      _
    %p195 = scmp.le.s32.totalorder 1, %s10
    %p196 = scmp.lt.s32.totalorder %s10, 13
    %p197 = pnand %p195, %p196
    %p198 = pneg %p197
    // Predicated region
    $region33: #{lraspp_forward.4} parent=5 // pred_check
      _
    $region34: #{lraspp_forward.4} parent=5 // pred_check_branch
      %200 = sbr.rel (%p197) target = $region36
    $region35: #{lraspp_forward.4} parent=5 // pred_region
      %s201 = ssub.s32 %s10, 1
      %p202 = pneg %p43
      %p203 = pneg %p40
      %p204 = pneg %p64
      %p205 = pneg %p61
      %p206 = scmp.lt.s32.totalorder %s19, 1
      %s207 = scalar_select %p206, %s19, 1
      %p208 = scmp.lt.s32.totalorder %s20, 5
      %s209 = scalar_select %p208, %s20, 5
      %s210 = smul.addr %s207, 6
      %s211 = sadd.s32 %s209, %s210
      %s212 = smul.addr %s211, 2
      %s213 = scalar_lea.vmem %s2, %s212
      %p214 = pneg %p92
      %p215 = pneg %p89
      %p216 = scmp.lt.s32.totalorder %s19, 1
      %s217 = scalar_select %p216, %s19, 1
      %p218 = scmp.lt.s32.totalorder %s20, 5
      %s219 = scalar_select %p218, %s20, 5
      %s220 = smul.addr %s217, 6
      %s221 = sadd.s32 %s219, %s220
      %s222 = smul.addr %s221, 4
      %s223 = scalar_lea.vmem %s3, %s222
      %p224 = pneg %p120
      %p225 = pneg %p117
      %p226 = pneg %p148
      %p227 = pneg %p145
      %p228 = scmp.lt.s32.totalorder %s19, 1
      %s229 = scalar_select %p228, %s19, 1
      %p230 = scmp.lt.s32.totalorder %s20, 5
      %s231 = scalar_select %p230, %s20, 5
      %s232 = smul.addr %s229, 6
      %s233 = sadd.s32 %s231, %s232
      %s234 = smul.addr %s233, 4
      %s235 = scalar_lea.vmem %s4, %s234
      %p236 = scmp.lt.s32.totalorder %s19, 1
      %s237 = scalar_select %p236, %s19, 1
      %p238 = scmp.lt.s32.totalorder %s20, 5
      %s239 = scalar_select %p238, %s20, 5
      %s240 = smul.addr %s237, 6
      %s241 = sadd.s32 %s239, %s240
      %s242 = smul.addr %s241, 2
      %s243 = scalar_lea.vmem %s2, %s242
      %p244 = scmp.lt.s32.totalorder %s19, 1
      %s245 = scalar_select %p244, %s19, 1
      %p246 = scmp.lt.s32.totalorder %s20, 5
      %s247 = scalar_select %p246, %s20, 5
      %s248 = smul.addr %s245, 6
      %s249 = sadd.s32 %s247, %s248
      %s250 = smul.addr %s249, 4
      %s251 = scalar_lea.vmem %s3, %s250
      %p252 = scmp.lt.s32.totalorder %s19, 1
      %s253 = scalar_select %p252, %s19, 1
      %p254 = scmp.lt.s32.totalorder %s20, 5
      %s255 = scalar_select %p254, %s20, 5
      %s256 = smul.addr %s253, 6
      %s257 = sadd.s32 %s255, %s256
      %s258 = smul.addr %s257, 4
      %s259 = scalar_lea.vmem %s4, %s258
      %v260 = vld [vmem:[%s0] sm:$0xf]
      %v261 = vld [vmem:[%s243] sm:$0x3]
      %vm262 = vcmask 15360
      %v264 = vsel %vm262, %v260, 0
      %vm266 = vcmask 1041408
      %v268 = vsel %vm266, %v261, 0
      %270 = vmatprep.subr.mxu0 0.0
      %271 = vmatpush1.msra.mxu0 0.0
      %272 = vmatprep.subr.mxu0 0.0
      %273 = vmatpush1.msra.mxu0 0.0
      %274 = vmatprep.subr.mxu0 0.0
      %275 = vmatpush1.msra.mxu0 0.0
      %276 = vmatprep.subr.mxu0 0.0
      %277 = vmatpush1.msra.mxu0 0.0
      %278 = vmatprep.subr.mxu0 0.0
      %279 = vmatpush1.msra.mxu0 0.0
      %280 = vmatprep.subr.mxu0 0.0
      %281 = vmatpush1.msra.mxu0 0.0
      %282 = vmatprep.subr.mxu0 0.0
      %283 = vmatpush1.msra.mxu0 0.0
      %284 = vmatprep.subr.mxu0 0.0
      %285 = vmatpush1.msra.mxu0 0.0
      %286 = vmatprep.subr.mxu0 0.0
      %287 = vmatpush1.msra.mxu0 0.0
      %288 = vmatprep.subr.mxu0 0.0
      %289 = vmatpush1.msra.mxu0 0.0
      %290 = vmatprep.subr.mxu0 0.0
      %291 = vmatpush1.msra.mxu0 0.0
      %292 = vmatprep.subr.mxu0 0.0
      %293 = vmatpush1.msra.mxu0 0.0
      %294 = vmatprep.subr.mxu0 0.0
      %295 = vmatpush1.msra.mxu0 0.0
      %296 = vmatprep.subr.mxu0 0.0
      %297 = vmatpush1.msra.mxu0 0.0
      %298 = vmatprep.subr.mxu0 0.0
      %299 = vmatpush1.msra.mxu0 0.0
      %300 = vmatprep.subr.mxu0 0.0
      %301 = vmatpush1.msra.mxu0 %v268
      %302 = vmatprep.subr.mxu0 0.0
      %303 = vmatpush2.msra.mxu0 0.0
      %304 = vmatprep.subr.mxu0 0.0
      %305 = vmatpush2.msra.mxu0 0.0
      %306 = vmatprep.subr.mxu0 0.0
      %307 = vmatpush2.msra.mxu0 0.0
      %308 = vmatprep.subr.mxu0 0.0
      %309 = vmatpush2.msra.mxu0 0.0
      %310 = vmatprep.subr.mxu0 0.0
      %311 = vmatpush2.msra.mxu0 0.0
      %312 = vmatprep.subr.mxu0 0.0
      %313 = vmatpush2.msra.mxu0 0.0
      %314 = vmatprep.subr.mxu0 0.0
      %315 = vmatpush2.msra.mxu0 0.0
      %316 = vmatprep.subr.mxu0 0.0
      %317 = vmatpush2.msra.mxu0 0.0
      %318 = vmatprep.subr.mxu0 0.0
      %319 = vmatpush2.msra.mxu0 0.0
      %320 = vmatprep.subr.mxu0 0.0
      %321 = vmatpush2.msra.mxu0 0.0
      %322 = vmatprep.subr.mxu0 0.0
      %323 = vmatpush2.msra.mxu0 0.0
      %324 = vmatprep.subr.mxu0 0.0
      %325 = vmatpush2.msra.mxu0 0.0
      %326 = vmatprep.subr.mxu0 0.0
      %327 = vmatpush2.msra.mxu0 0.0
      %328 = vmatprep.subr.mxu0 0.0
      %329 = vmatpush2.msra.mxu0 0.0
      %330 = vmatprep.subr.mxu0 0.0
      %331 = vmatpush2.msra.mxu0 0.0
      %332 = vmatprep.subr.mxu0 0.0
      %333 = vmatpush2.msra.mxu0 0.0
      %334 = vmatprep.mubr.f32.mxu0 0.0
      %335 = vmatmul.mubr.f32.gmra.mxu0 %v264
      %v336 = vpop.f32.mrf.mxu0
      %v337 = vadd.f32 0.0, %v336
      %v338 = vpop.f32.mrf.mxu0
      %339 = vdwg.mxu0
      %v340 = vld [vmem:[%s1] sm:$0x3]
      %v341 = vld [vmem:[%s251] sm:$0xf]
      %v343 = vsel %vm262, %v337, 0
      %v346 = vsel %vm266, %v340, 0
      %348 = vmatprep.subr.mxu0 0.0
      %349 = vmatpush1.msra.mxu0 0.0
      %350 = vmatprep.subr.mxu0 0.0
      %351 = vmatpush1.msra.mxu0 0.0
      %352 = vmatprep.subr.mxu0 0.0
      %353 = vmatpush1.msra.mxu0 0.0
      %354 = vmatprep.subr.mxu0 0.0
      %355 = vmatpush1.msra.mxu0 0.0
      %356 = vmatprep.subr.mxu0 0.0
      %357 = vmatpush1.msra.mxu0 0.0
      %358 = vmatprep.subr.mxu0 0.0
      %359 = vmatpush1.msra.mxu0 0.0
      %360 = vmatprep.subr.mxu0 0.0
      %361 = vmatpush1.msra.mxu0 0.0
      %362 = vmatprep.subr.mxu0 0.0
      %363 = vmatpush1.msra.mxu0 0.0
      %364 = vmatprep.subr.mxu0 0.0
      %365 = vmatpush1.msra.mxu0 0.0
      %366 = vmatprep.subr.mxu0 0.0
      %367 = vmatpush1.msra.mxu0 0.0
      %368 = vmatprep.subr.mxu0 0.0
      %369 = vmatpush1.msra.mxu0 0.0
      %370 = vmatprep.subr.mxu0 0.0
      %371 = vmatpush1.msra.mxu0 0.0
      %372 = vmatprep.subr.mxu0 0.0
      %373 = vmatpush1.msra.mxu0 0.0
      %374 = vmatprep.subr.mxu0 0.0
      %375 = vmatpush1.msra.mxu0 0.0
      %376 = vmatprep.subr.mxu0 0.0
      %377 = vmatpush1.msra.mxu0 0.0
      %378 = vmatprep.subr.mxu0 0.0
      %379 = vmatpush1.msra.mxu0 %v346
      %380 = vmatprep.subr.mxu0 0.0
      %381 = vmatpush2.msra.mxu0 0.0
      %382 = vmatprep.subr.mxu0 0.0
      %383 = vmatpush2.msra.mxu0 0.0
      %384 = vmatprep.subr.mxu0 0.0
      %385 = vmatpush2.msra.mxu0 0.0
      %386 = vmatprep.subr.mxu0 0.0
      %387 = vmatpush2.msra.mxu0 0.0
      %388 = vmatprep.subr.mxu0 0.0
      %389 = vmatpush2.msra.mxu0 0.0
      %390 = vmatprep.subr.mxu0 0.0
      %391 = vmatpush2.msra.mxu0 0.0
      %392 = vmatprep.subr.mxu0 0.0
      %393 = vmatpush2.msra.mxu0 0.0
      %394 = vmatprep.subr.mxu0 0.0
      %395 = vmatpush2.msra.mxu0 0.0
      %396 = vmatprep.subr.mxu0 0.0
      %397 = vmatpush2.msra.mxu0 0.0
      %398 = vmatprep.subr.mxu0 0.0
      %399 = vmatpush2.msra.mxu0 0.0
      %400 = vmatprep.subr.mxu0 0.0
      %401 = vmatpush2.msra.mxu0 0.0
      %402 = vmatprep.subr.mxu0 0.0
      %403 = vmatpush2.msra.mxu0 0.0
      %404 = vmatprep.subr.mxu0 0.0
      %405 = vmatpush2.msra.mxu0 0.0
      %406 = vmatprep.subr.mxu0 0.0
      %407 = vmatpush2.msra.mxu0 0.0
      %408 = vmatprep.subr.mxu0 0.0
      %409 = vmatpush2.msra.mxu0 0.0
      %410 = vmatprep.subr.mxu0 0.0
      %411 = vmatpush2.msra.mxu0 0.0
      %412 = vmatprep.mubr.f32.mxu0 0.0
      %413 = vmatmul.mubr.f32.gmra.mxu0 %v343
      %v414 = vpop.f32.mrf.mxu0
      %v415 = vadd.f32 %v341, %v414
      %v416 = vpop.f32.mrf.mxu0
      %417 = vdwg.mxu0
      %vm418 = vcmask 27648
      %419 = vst.msk [vmem:[%s259] sm:$0xf] %vm418, %v415
      %p420 = scmp.lt.s32.totalorder %s19, 1
      %s421 = scalar_select %p420, %s19, 1
      %p422 = scmp.lt.s32.totalorder %s20, 5
      %s423 = scalar_select %p422, %s20, 5
      %s424 = smul.addr %s421, 6
      %s425 = sadd.s32 %s423, %s424
      %s426 = smul.addr %s425, 4
      %s427 = scalar_lea.vmem %s4, %s426
      // Predicated region
      $region37: #{lraspp_forward.4} parent=35 // pred_check
        %p428 = pneg %p145
      $region38: #{lraspp_forward.4} parent=35 // pred_check_branch
        %430 = sbr.rel (%p428) target = $region40
      $region39: #{lraspp_forward.4} parent=35 // pred_region
        _
      $region40: #{lraspp_forward.4} parent=35 // pred_fallthru
        _
    $region36: #{lraspp_forward.4} parent=5 // pred_fallthru
      _
    %p431 = scmp.le.s32.totalorder 2, %s10
    // Predicated region
    $region41: #{lraspp_forward.4} parent=5 // pred_check
      %p432 = pneg %p431
    $region42: #{lraspp_forward.4} parent=5 // pred_check_branch
      %434 = sbr.rel (%p432) target = $region44
    $region43: #{lraspp_forward.4} parent=5 // pred_region
      %s435 = ssub.s32 %s10, 2
      // Predicated region
      $region45: #{lraspp_forward.4} parent=43 // pred_check
        %p436 = pneg %p151
      $region46: #{lraspp_forward.4} parent=43 // pred_check_branch
        %438 = sbr.rel (%p436) target = $region48
      $region47: #{lraspp_forward.4} parent=43 // pred_region
        %p439 = scmp.lt.s32.totalorder %s21, 1
        %s440 = scalar_select %p439, %s21, 1
        %p441 = scmp.lt.s32.totalorder %s22, 5
        %s442 = scalar_select %p441, %s22, 5
        %s443 = smul.addr %s440, 6
        %s444 = sadd.s32 %s442, %s443
        %s445 = smul.addr %s444, 4
        %s446 = scalar_lea.vmem %s4, %s445
      $region48: #{lraspp_forward.4} parent=43 // pred_fallthru
        _
    $region44: #{lraspp_forward.4} parent=5 // pred_fallthru
      _
  $region6: #{lraspp_forward.4} parent=0 // loop_footer
    %s14 = sadd.s32 1, %s10
  $region7: #{lraspp_forward.4} parent=0 // loop_footer_branch
    %9 = sbr.rel target = $region3
  $region8: #{lraspp_forward.4} parent=0 // loop_exit
    _

// kernel: lraspp_forward.3
$region0: #{lraspp_forward.3}
  #allocation0 [shape = 'u32[]', space=smem, size = 0x4, offset = 0x4, fixed_abs, tag = 'smem constant byte address 0x4 - core index']
  #allocation1 [shape = 'u32[144,128]{1,0:T(1,128)}', space=vmem, size = 0x12000, scoped, tag = 'internal scratch']
  %s0 = inlined_call_operand.vmem [shape: f32[2,16,4], index: 0, kind: input, shape index: {}]
  %s1 = inlined_call_operand.vmem [shape: f32[2,8,16], index: 1, kind: input, shape index: {}]
  %s2 = inlined_call_operand.vmem [shape: f32[32,16], index: 2, kind: input, shape index: {}]
  %s3 = inlined_call_operand.vmem [shape: f32[32,1], index: 3, kind: input, shape index: {}]
  %s4 = inlined_call_operand.vmem [shape: f32[32,16], index: 4, kind: input, shape index: {}]
  %s5 = inlined_call_operand.vmem [shape: f32[6,32], index: 5, kind: input, shape index: {}]
  %s6 = inlined_call_operand.vmem [shape: f32[6,1], index: 6, kind: input, shape index: {}]
  %s7 = inlined_call_operand.vmem [shape: f32[6,8], index: 7, kind: input, shape index: {}]
  %s8 = inlined_call_operand.vmem [shape: f32[6,1], index: 8, kind: input, shape index: {}]
  %s9 = inlined_call_operand.vmem [shape: f32[2,6,4], index: 9, kind: output, shape index: {0}]
  %s10 = inlined_call_operand.vmem [shape: f32[2,6,16], index: 10, kind: output, shape index: {1}]
  %11 = xla_tuple %s9, %s10
  %s12 = sld [smem:[#allocation0]]
  $region77: #{lraspp_forward.3} parent=0
    _
  %s14 = ssub.s32 1, %s12
  %s15 = scalar_select 0, %s14, %s12
  loop: start=0, step=1, limit=4
  $region2: #{lraspp_forward.3} parent=0 // loop_pre_header
    _
  $region3: #{lraspp_forward.3} parent=0 // loop_header
    %s17 = sphi 0, %s21
    %p18 = scmp.ge.s32.totalorder %s17, 4
    %s27 = sphi 0, %s29
    %s30 = sphi 0, %s27
    %s31 = sphi 0, %s30
    %s47 = sphi 0, %s31
    %s53 = sphi 0, %s55
    %s56 = sphi 0, %s53
    %s57 = sphi 0, %s56
    %s73 = sphi 0, %s57
    %s77 = sphi 0, %s77
    %s79 = sphi 0, %s77
    %s80 = sphi 0, %s79
    %s94 = sphi 0, %s80
    %s98 = sphi 0, %s98
    %s100 = sphi 0, %s98
    %s101 = sphi 0, %s100
    %s115 = sphi 0, %s101
    %s119 = sphi 0, %s119
    %s121 = sphi 0, %s119
    %s122 = sphi 0, %s121
    %s136 = sphi 0, %s122
    %s140 = sphi 0, %s140
    %s142 = sphi 0, %s140
    %s143 = sphi 0, %s142
    %s157 = sphi 0, %s143
    %s161 = sphi 0, %s161
    %s163 = sphi 0, %s161
    %s164 = sphi 0, %s163
    %s178 = sphi 0, %s164
    %s182 = sphi 0, %s182
    %s184 = sphi 0, %s182
    %s185 = sphi 0, %s184
    %s199 = sphi 0, %s185
    %s203 = sphi 0, %s203
    %s205 = sphi 0, %s203
    %s206 = sphi 0, %s205
    %s220 = sphi 0, %s206
    %s226 = sphi 0, %s228
    %s229 = sphi 0, %s226
    %s230 = sphi 0, %s229
    %s246 = sphi 0, %s230
    %s252 = sphi 0, %s254
    %s255 = sphi 0, %s252
    %s256 = sphi 0, %s255
    %s272 = sphi 0, %s256
  $region4: #{lraspp_forward.3} parent=0 // loop_header_branch
    %20 = sbr.rel (%p18) target = $region8
  $region5: #{lraspp_forward.3} parent=0 // loop_body
    %s22 = ssub.s32 %s17, 1
    %s23 = ssub.s32 %s17, 2
    %s24 = sadd.s32 %s17, 1
    %s25 = ssub.s32 %s17, %s24
    %p26 = scmp.eq.s32.totalorder %s25, 0
    %s28 = sadd.s32 %s27, 1
    %s29 = scalar_select %p26, %s27, %s28
    %p32 = pneg %p26
    %p33 = scmp.eq.s32.totalorder %s17, 1
    %p34 = por %p32, %p33
    %p35 = scmp.ne.s32.totalorder %s27, %s30
    %p36 = scmp.eq.s32.totalorder %s17, 0
    %p37 = por %p35, %p36
    %p38 = scmp.ne.s32.totalorder %s27, %s30
    %p39 = scmp.eq.s32.totalorder %s22, 1
    %p40 = por %p38, %p39
    %p41 = scmp.ne.s32.totalorder %s30, %s31
    %p42 = scmp.eq.s32.totalorder %s22, 0
    %p43 = por %p41, %p42
    %p44 = scmp.ne.s32.totalorder %s30, %s31
    %p45 = scmp.eq.s32.totalorder %s23, 1
    %p46 = por %p44, %p45
    %p48 = scmp.ne.s32.totalorder %s31, %s47
    %p49 = scmp.eq.s32.totalorder %s23, 0
    %p50 = por %p48, %p49
    %s51 = ssub.s32 %s17, %s24
    %p52 = scmp.eq.s32.totalorder %s51, 0
    %s54 = sadd.s32 %s53, 1
    %s55 = scalar_select %p52, %s53, %s54
    %p58 = pneg %p52
    %p59 = scmp.eq.s32.totalorder %s17, 1
    %p60 = por %p58, %p59
    %p61 = scmp.ne.s32.totalorder %s53, %s56
    %p62 = scmp.eq.s32.totalorder %s17, 0
    %p63 = por %p61, %p62
    %p64 = scmp.ne.s32.totalorder %s53, %s56
    %p65 = scmp.eq.s32.totalorder %s22, 1
    %p66 = por %p64, %p65
    %p67 = scmp.ne.s32.totalorder %s56, %s57
    %p68 = scmp.eq.s32.totalorder %s22, 0
    %p69 = por %p67, %p68
    %p70 = scmp.ne.s32.totalorder %s56, %s57
    %p71 = scmp.eq.s32.totalorder %s23, 1
    %p72 = por %p70, %p71
    %p74 = scmp.ne.s32.totalorder %s57, %s73
    %p75 = scmp.eq.s32.totalorder %s23, 0
    %p76 = por %p74, %p75
    %s78 = sadd.s32 %s77, 1
    %p81 = scmp.eq.s32.totalorder %s17, 1
    %p82 = scmp.ne.s32.totalorder %s77, %s79
    %p83 = scmp.eq.s32.totalorder %s17, 0
    %p84 = por %p82, %p83
    %p85 = scmp.ne.s32.totalorder %s77, %s79
    %p86 = scmp.eq.s32.totalorder %s22, 1
    %p87 = por %p85, %p86
    %p88 = scmp.ne.s32.totalorder %s79, %s80
    %p89 = scmp.eq.s32.totalorder %s22, 0
    %p90 = por %p88, %p89
    %p91 = scmp.ne.s32.totalorder %s79, %s80
    %p92 = scmp.eq.s32.totalorder %s23, 1
    %p93 = por %p91, %p92
    %p95 = scmp.ne.s32.totalorder %s80, %s94
    %p96 = scmp.eq.s32.totalorder %s23, 0
    %p97 = por %p95, %p96
    %s99 = sadd.s32 %s98, 1
    %p102 = scmp.eq.s32.totalorder %s17, 1
    %p103 = scmp.ne.s32.totalorder %s98, %s100
    %p104 = scmp.eq.s32.totalorder %s17, 0
    %p105 = por %p103, %p104
    %p106 = scmp.ne.s32.totalorder %s98, %s100
    %p107 = scmp.eq.s32.totalorder %s22, 1
    %p108 = por %p106, %p107
    %p109 = scmp.ne.s32.totalorder %s100, %s101
    %p110 = scmp.eq.s32.totalorder %s22, 0
    %p111 = por %p109, %p110
    %p112 = scmp.ne.s32.totalorder %s100, %s101
    %p113 = scmp.eq.s32.totalorder %s23, 1
    %p114 = por %p112, %p113
    %p116 = scmp.ne.s32.totalorder %s101, %s115
    %p117 = scmp.eq.s32.totalorder %s23, 0
    %p118 = por %p116, %p117
    %s120 = sadd.s32 %s119, 1
    %p123 = scmp.eq.s32.totalorder %s17, 1
    %p124 = scmp.ne.s32.totalorder %s119, %s121
    %p125 = scmp.eq.s32.totalorder %s17, 0
    %p126 = por %p124, %p125
    %p127 = scmp.ne.s32.totalorder %s119, %s121
    %p128 = scmp.eq.s32.totalorder %s22, 1
    %p129 = por %p127, %p128
    %p130 = scmp.ne.s32.totalorder %s121, %s122
    %p131 = scmp.eq.s32.totalorder %s22, 0
    %p132 = por %p130, %p131
    %p133 = scmp.ne.s32.totalorder %s121, %s122
    %p134 = scmp.eq.s32.totalorder %s23, 1
    %p135 = por %p133, %p134
    %p137 = scmp.ne.s32.totalorder %s122, %s136
    %p138 = scmp.eq.s32.totalorder %s23, 0
    %p139 = por %p137, %p138
    %s141 = sadd.s32 %s140, 1
    %p144 = scmp.eq.s32.totalorder %s17, 1
    %p145 = scmp.ne.s32.totalorder %s140, %s142
    %p146 = scmp.eq.s32.totalorder %s17, 0
    %p147 = por %p145, %p146
    %p148 = scmp.ne.s32.totalorder %s140, %s142
    %p149 = scmp.eq.s32.totalorder %s22, 1
    %p150 = por %p148, %p149
    %p151 = scmp.ne.s32.totalorder %s142, %s143
    %p152 = scmp.eq.s32.totalorder %s22, 0
    %p153 = por %p151, %p152
    %p154 = scmp.ne.s32.totalorder %s142, %s143
    %p155 = scmp.eq.s32.totalorder %s23, 1
    %p156 = por %p154, %p155
    %p158 = scmp.ne.s32.totalorder %s143, %s157
    %p159 = scmp.eq.s32.totalorder %s23, 0
    %p160 = por %p158, %p159
    %s162 = sadd.s32 %s161, 1
    %p165 = scmp.eq.s32.totalorder %s17, 1
    %p166 = scmp.ne.s32.totalorder %s161, %s163
    %p167 = scmp.eq.s32.totalorder %s17, 0
    %p168 = por %p166, %p167
    %p169 = scmp.ne.s32.totalorder %s161, %s163
    %p170 = scmp.eq.s32.totalorder %s22, 1
    %p171 = por %p169, %p170
    %p172 = scmp.ne.s32.totalorder %s163, %s164
    %p173 = scmp.eq.s32.totalorder %s22, 0
    %p174 = por %p172, %p173
    %p175 = scmp.ne.s32.totalorder %s163, %s164
    %p176 = scmp.eq.s32.totalorder %s23, 1
    %p177 = por %p175, %p176
    %p179 = scmp.ne.s32.totalorder %s164, %s178
    %p180 = scmp.eq.s32.totalorder %s23, 0
    %p181 = por %p179, %p180
    %s183 = sadd.s32 %s182, 1
    %p186 = scmp.eq.s32.totalorder %s17, 1
    %p187 = scmp.ne.s32.totalorder %s182, %s184
    %p188 = scmp.eq.s32.totalorder %s17, 0
    %p189 = por %p187, %p188
    %p190 = scmp.ne.s32.totalorder %s182, %s184
    %p191 = scmp.eq.s32.totalorder %s22, 1
    %p192 = por %p190, %p191
    %p193 = scmp.ne.s32.totalorder %s184, %s185
    %p194 = scmp.eq.s32.totalorder %s22, 0
    %p195 = por %p193, %p194
    %p196 = scmp.ne.s32.totalorder %s184, %s185
    %p197 = scmp.eq.s32.totalorder %s23, 1
    %p198 = por %p196, %p197
    %p200 = scmp.ne.s32.totalorder %s185, %s199
    %p201 = scmp.eq.s32.totalorder %s23, 0
    %p202 = por %p200, %p201
    %s204 = sadd.s32 %s203, 1
    %p207 = scmp.eq.s32.totalorder %s17, 1
    %p208 = scmp.ne.s32.totalorder %s203, %s205
    %p209 = scmp.eq.s32.totalorder %s17, 0
    %p210 = por %p208, %p209
    %p211 = scmp.ne.s32.totalorder %s203, %s205
    %p212 = scmp.eq.s32.totalorder %s22, 1
    %p213 = por %p211, %p212
    %p214 = scmp.ne.s32.totalorder %s205, %s206
    %p215 = scmp.eq.s32.totalorder %s22, 0
    %p216 = por %p214, %p215
    %p217 = scmp.ne.s32.totalorder %s205, %s206
    %p218 = scmp.eq.s32.totalorder %s23, 1
    %p219 = por %p217, %p218
    %p221 = scmp.ne.s32.totalorder %s206, %s220
    %p222 = scmp.eq.s32.totalorder %s23, 0
    %p223 = por %p221, %p222
    %s224 = ssub.s32 %s17, %s24
    %p225 = scmp.eq.s32.totalorder %s224, 0
    %s227 = sadd.s32 %s226, 1
    %s228 = scalar_select %p225, %s226, %s227
    %p231 = pneg %p225
    %p232 = scmp.eq.s32.totalorder %s17, 1
    %p233 = por %p231, %p232
    %p234 = scmp.ne.s32.totalorder %s226, %s229
    %p235 = scmp.eq.s32.totalorder %s17, 0
    %p236 = por %p234, %p235
    %p237 = scmp.ne.s32.totalorder %s226, %s229
    %p238 = scmp.eq.s32.totalorder %s22, 1
    %p239 = por %p237, %p238
    %p240 = scmp.ne.s32.totalorder %s229, %s230
    %p241 = scmp.eq.s32.totalorder %s22, 0
    %p242 = por %p240, %p241
    %p243 = scmp.ne.s32.totalorder %s229, %s230
    %p244 = scmp.eq.s32.totalorder %s23, 1
    %p245 = por %p243, %p244
    %p247 = scmp.ne.s32.totalorder %s230, %s246
    %p248 = scmp.eq.s32.totalorder %s23, 0
    %p249 = por %p247, %p248
    %s250 = ssub.s32 %s17, %s24
    %p251 = scmp.eq.s32.totalorder %s250, 0
    %s253 = sadd.s32 %s252, 1
    %s254 = scalar_select %p251, %s252, %s253
    %p257 = pneg %p251
    %p258 = scmp.eq.s32.totalorder %s17, 1
    %p259 = por %p257, %p258
    %p260 = scmp.ne.s32.totalorder %s252, %s255
    %p261 = scmp.eq.s32.totalorder %s17, 0
    %p262 = por %p260, %p261
    %p263 = scmp.ne.s32.totalorder %s252, %s255
    %p264 = scmp.eq.s32.totalorder %s22, 1
    %p265 = por %p263, %p264
    %p266 = scmp.ne.s32.totalorder %s255, %s256
    %p267 = scmp.eq.s32.totalorder %s22, 0
    %p268 = por %p266, %p267
    %p269 = scmp.ne.s32.totalorder %s255, %s256
    %p270 = scmp.eq.s32.totalorder %s23, 1
    %p271 = por %p269, %p270
    %p273 = scmp.ne.s32.totalorder %s256, %s272
    %p274 = scmp.eq.s32.totalorder %s23, 0
    %p275 = por %p273, %p274
    %p276 = scmp.le.s32.totalorder 1, %s17
    %p277 = scmp.lt.s32.totalorder %s17, 3
    %p278 = pnand %p276, %p277
    %p279 = pneg %p278
    // Predicated region
    $region9: #{lraspp_forward.3} parent=5 // pred_check
      _
    $region10: #{lraspp_forward.3} parent=5 // pred_check_branch
      %281 = sbr.rel (%p278) target = $region12
    $region11: #{lraspp_forward.3} parent=5 // pred_region
      %s282 = ssub.s32 %s17, 1
      // Predicated region
      $region13: #{lraspp_forward.3} parent=11 // pred_check
        %p283 = pneg %p90
      $region14: #{lraspp_forward.3} parent=11 // pred_check_branch
        %285 = sbr.rel (%p283) target = $region16
      $region15: #{lraspp_forward.3} parent=11 // pred_region
        _
      $region16: #{lraspp_forward.3} parent=11 // pred_fallthru
        _
      // Predicated region
      $region17: #{lraspp_forward.3} parent=11 // pred_check
        %p286 = pneg %p111
      $region18: #{lraspp_forward.3} parent=11 // pred_check_branch
        %288 = sbr.rel (%p286) target = $region20
      $region19: #{lraspp_forward.3} parent=11 // pred_region
        _
      $region20: #{lraspp_forward.3} parent=11 // pred_fallthru
        _
      // Predicated region
      $region21: #{lraspp_forward.3} parent=11 // pred_check
        %p289 = pneg %p132
      $region22: #{lraspp_forward.3} parent=11 // pred_check_branch
        %291 = sbr.rel (%p289) target = $region24
      $region23: #{lraspp_forward.3} parent=11 // pred_region
        _
      $region24: #{lraspp_forward.3} parent=11 // pred_fallthru
        _
      // Predicated region
      $region25: #{lraspp_forward.3} parent=11 // pred_check
        %p292 = pneg %p153
      $region26: #{lraspp_forward.3} parent=11 // pred_check_branch
        %294 = sbr.rel (%p292) target = $region28
      $region27: #{lraspp_forward.3} parent=11 // pred_region
        _
      $region28: #{lraspp_forward.3} parent=11 // pred_fallthru
        _
      // Predicated region
      $region29: #{lraspp_forward.3} parent=11 // pred_check
        %p295 = pneg %p174
      $region30: #{lraspp_forward.3} parent=11 // pred_check_branch
        %297 = sbr.rel (%p295) target = $region32
      $region31: #{lraspp_forward.3} parent=11 // pred_region
        _
      $region32: #{lraspp_forward.3} parent=11 // pred_fallthru
        _
      // Predicated region
      $region33: #{lraspp_forward.3} parent=11 // pred_check
        %p298 = pneg %p195
      $region34: #{lraspp_forward.3} parent=11 // pred_check_branch
        %300 = sbr.rel (%p298) target = $region36
      $region35: #{lraspp_forward.3} parent=11 // pred_region
        _
      $region36: #{lraspp_forward.3} parent=11 // pred_fallthru
        _
      // Predicated region
      $region37: #{lraspp_forward.3} parent=11 // pred_check
        %p301 = pneg %p216
      $region38: #{lraspp_forward.3} parent=11 // pred_check_branch
        %303 = sbr.rel (%p301) target = $region40
      $region39: #{lraspp_forward.3} parent=11 // pred_region
        _
      $region40: #{lraspp_forward.3} parent=11 // pred_fallthru
        _
    $region12: #{lraspp_forward.3} parent=5 // pred_fallthru
      _
    %p304 = scmp.lt.s32.totalorder %s17, 2
    // Predicated region
    $region41: #{lraspp_forward.3} parent=5 // pred_check
      %p305 = pneg %p304
    $region42: #{lraspp_forward.3} parent=5 // pred_check_branch
      %307 = sbr.rel (%p305) target = $region44
    $region43: #{lraspp_forward.3} parent=5 // pred_region
      // Predicated region
      $region45: #{lraspp_forward.3} parent=43 // pred_check
        %p308 = pneg %p37
      $region46: #{lraspp_forward.3} parent=43 // pred_check_branch
        %310 = sbr.rel (%p308) target = $region48
      $region47: #{lraspp_forward.3} parent=43 // pred_region
        %p311 = scmp.lt.s32.totalorder %s17, 1
        %s312 = scalar_select %p311, %s17, 1
        %s313 = smul.addr %s312, 2
        %s314 = smul.addr %s313, 8
        %s315 = scalar_lea.vmem %s0, %s314
      $region48: #{lraspp_forward.3} parent=43 // pred_fallthru
        _
      // Predicated region
      $region49: #{lraspp_forward.3} parent=43 // pred_check
        %p316 = pneg %p63
      $region50: #{lraspp_forward.3} parent=43 // pred_check_branch
        %318 = sbr.rel (%p316) target = $region52
      $region51: #{lraspp_forward.3} parent=43 // pred_region
        %p319 = scmp.lt.s32.totalorder %s17, 1
        %s320 = scalar_select %p319, %s17, 1
        %s321 = smul.addr %s320, 8
        %s322 = scalar_lea.vmem %s1, %s321
      $region52: #{lraspp_forward.3} parent=43 // pred_fallthru
        _
    $region44: #{lraspp_forward.3} parent=5 // pred_fallthru
      _
    %p323 = scmp.le.s32.totalorder 1, %s17
    %p324 = scmp.lt.s32.totalorder %s17, 3
    %p325 = pnand %p323, %p324
    %p326 = pneg %p325
    // Predicated region
    $region53: #{lraspp_forward.3} parent=5 // pred_check
      _
    $region54: #{lraspp_forward.3} parent=5 // pred_check_branch
      %328 = sbr.rel (%p325) target = $region56
    $region55: #{lraspp_forward.3} parent=5 // pred_region
      %s329 = ssub.s32 %s17, 1
      %p330 = scmp.lt.s32.totalorder %s22, 1
      %s331 = scalar_select %p330, %s22, 1
      %s332 = smul.addr %s331, 2
      %s333 = smul.addr %s332, 8
      %s334 = scalar_lea.vmem %s0, %s333
      %p335 = pneg %p43
      %p336 = pneg %p40
      %p337 = scmp.lt.s32.totalorder %s22, 1
      %s338 = scalar_select %p337, %s22, 1
      %s339 = smul.addr %s338, 8
      %s340 = scalar_lea.vmem %s1, %s339
      %p341 = pneg %p69
      %p342 = pneg %p66
      %p343 = pneg %p90
      %p344 = pneg %p87
      %p345 = pneg %p111
      %p346 = pneg %p108
      %p347 = pneg %p132
      %p348 = pneg %p129
      %p349 = pneg %p153
      %p350 = pneg %p150
      %p351 = pneg %p174
      %p352 = pneg %p171
      %p353 = pneg %p195
      %p354 = pneg %p192
      %p355 = pneg %p216
      %p356 = pneg %p213
      %p357 = pneg %p242
      %p358 = pneg %p239
      %p359 = scmp.lt.s32.totalorder %s22, 1
      %s360 = scalar_select %p359, %s22, 1
      %s361 = smul.addr %s360, 8
      %s362 = scalar_lea.vmem %s9, %s361
      %p363 = pneg %p268
      %p364 = pneg %p265
      %p365 = scmp.lt.s32.totalorder %s22, 1
      %s366 = scalar_select %p365, %s22, 1
      %s367 = smul.addr %s366, 8
      %s368 = scalar_lea.vmem %s10, %s367
      %p369 = scmp.lt.s32.totalorder %s22, 1
      %s370 = scalar_select %p369, %s22, 1
      %s371 = smul.addr %s370, 2
      %s372 = smul.addr %s371, 8
      %s373 = scalar_lea.vmem %s0, %s372
      %p374 = scmp.lt.s32.totalorder %s22, 1
      %s375 = scalar_select %p374, %s22, 1
      %s376 = smul.addr %s375, 8
      %s377 = scalar_lea.vmem %s1, %s376
      %p378 = scmp.lt.s32.totalorder %s22, 1
      %s379 = scalar_select %p378, %s22, 1
      %s380 = smul.addr %s379, 8
      %s381 = scalar_lea.vmem %s9, %s380
      %p382 = scmp.lt.s32.totalorder %s22, 1
      %s383 = scalar_select %p382, %s22, 1
      %s384 = smul.addr %s383, 8
      %s385 = scalar_lea.vmem %s10, %s384
      %v386 = vld [vmem:[%s373] sm:$0xff]
      %v387 = vld [vmem:[%s373 + $0x8] sm:$0xff]
      %vm388 = vcmask 31744
      %v390 = vsel %vm388, %v386, 0
      %v393 = vsel %vm388, %v387, 0
      %vm395 = vcmask 1043456
      %v397 = vsel %vm395, 0.25, 0
      %399 = vmatprep.subr.mxu0 0.0
      %400 = vmatpush1.msra.mxu0 0.0
      %401 = vmatprep.subr.mxu0 0.0
      %402 = vmatpush1.msra.mxu0 0.0
      %403 = vmatprep.subr.mxu0 0.0
      %404 = vmatpush1.msra.mxu0 0.0
      %405 = vmatprep.subr.mxu0 0.0
      %406 = vmatpush1.msra.mxu0 0.0
      %407 = vmatprep.subr.mxu0 0.0
      %408 = vmatpush1.msra.mxu0 0.0
      %409 = vmatprep.subr.mxu0 0.0
      %410 = vmatpush1.msra.mxu0 0.0
      %411 = vmatprep.subr.mxu0 0.0
      %412 = vmatpush1.msra.mxu0 0.0
      %413 = vmatprep.subr.mxu0 0.0
      %414 = vmatpush1.msra.mxu0 0.0
      %415 = vmatprep.subr.mxu0 0.0
      %416 = vmatpush1.msra.mxu0 0.0
      %417 = vmatprep.subr.mxu0 0.0
      %418 = vmatpush1.msra.mxu0 0.0
      %419 = vmatprep.subr.mxu0 0.0
      %420 = vmatpush1.msra.mxu0 0.0
      %421 = vmatprep.subr.mxu0 0.0
      %422 = vmatpush1.msra.mxu0 0.0
      %423 = vmatprep.subr.mxu0 0.0
      %424 = vmatpush1.msra.mxu0 0.0
      %425 = vmatprep.subr.mxu0 0.0
      %426 = vmatpush1.msra.mxu0 0.0
      %427 = vmatprep.subr.mxu0 0.0
      %428 = vmatpush1.msra.mxu0 0.0
      %429 = vmatprep.subr.mxu0 0.0
      %430 = vmatpush1.msra.mxu0 %v397
      %431 = vmatprep.subr.mxu0 0.0
      %432 = vmatpush2.msra.mxu0 0.0
      %433 = vmatprep.subr.mxu0 0.0
      %434 = vmatpush2.msra.mxu0 0.0
      %435 = vmatprep.subr.mxu0 0.0
      %436 = vmatpush2.msra.mxu0 0.0
      %437 = vmatprep.subr.mxu0 0.0
      %438 = vmatpush2.msra.mxu0 0.0
      %439 = vmatprep.subr.mxu0 0.0
      %440 = vmatpush2.msra.mxu0 0.0
      %441 = vmatprep.subr.mxu0 0.0
      %442 = vmatpush2.msra.mxu0 0.0
      %443 = vmatprep.subr.mxu0 0.0
      %444 = vmatpush2.msra.mxu0 0.0
      %445 = vmatprep.subr.mxu0 0.0
      %446 = vmatpush2.msra.mxu0 0.0
      %447 = vmatprep.subr.mxu0 0.0
      %448 = vmatpush2.msra.mxu0 0.0
      %449 = vmatprep.subr.mxu0 0.0
      %450 = vmatpush2.msra.mxu0 0.0
      %451 = vmatprep.subr.mxu0 0.0
      %452 = vmatpush2.msra.mxu0 0.0
      %453 = vmatprep.subr.mxu0 0.0
      %454 = vmatpush2.msra.mxu0 0.0
      %455 = vmatprep.subr.mxu0 0.0
      %456 = vmatpush2.msra.mxu0 0.0
      %457 = vmatprep.subr.mxu0 0.0
      %458 = vmatpush2.msra.mxu0 0.0
      %459 = vmatprep.subr.mxu0 0.0
      %460 = vmatpush2.msra.mxu0 0.0
      %461 = vmatprep.subr.mxu0 0.0
      %462 = vmatpush2.msra.mxu0 0.0
      %463 = vmatprep.mubr.f32.mxu0 0.0
      %464 = vmatmul.mubr.f32.gmra.mxu0 %v390
      %v465 = vpop.f32.mrf.mxu0
      %v466 = vadd.f32 0.0, %v465
      %v467 = vpop.f32.mrf.mxu0
      %468 = vmatprep.mubr.f32.mxu0 0.0
      %469 = vmatmul.mubr.f32.gmra.mxu0 %v393
      %v470 = vpop.f32.mrf.mxu0
      %v471 = vadd.f32 0.0, %v470
      %v472 = vpop.f32.mrf.mxu0
      %473 = vdwg.mxu0
      %v474 = vld [vmem:[%s4] sm:$0xff]
      %v475 = vld [vmem:[%s4 + $0x8] sm:$0xff]
      %v476 = vld [vmem:[%s4 + $0x10] sm:$0xff]
      %v477 = vld [vmem:[%s4 + $0x18] sm:$0xff]
      %vm478 = vcmask 130048
      %v480 = vsel %vm478, %v474, 0
      %v483 = vsel %vm478, %v475, 0
      %v486 = vsel %vm478, %v476, 0
      %v489 = vsel %vm478, %v477, 0
      %491 = vmatprep.subr.mxu0 0.0
      %492 = vmatpush1.msra.mxu0 0.0
      %493 = vmatprep.subr.mxu0 0.0
      %494 = vmatpush1.msra.mxu0 0.0
      %495 = vmatprep.subr.mxu0 0.0
      %496 = vmatpush1.msra.mxu0 0.0
      %497 = vmatprep.subr.mxu0 0.0
      %498 = vmatpush1.msra.mxu0 0.0
      %499 = vmatprep.subr.mxu0 0.0
      %500 = vmatpush1.msra.mxu0 0.0
      %501 = vmatprep.subr.mxu0 0.0
      %502 = vmatpush1.msra.mxu0 0.0
      %503 = vmatprep.subr.mxu0 0.0
      %504 = vmatpush1.msra.mxu0 0.0
      %505 = vmatprep.subr.mxu0 0.0
      %506 = vmatpush1.msra.mxu0 0.0
      %507 = vmatprep.subr.mxu0 0.0
      %508 = vmatpush1.msra.mxu0 0.0
      %509 = vmatprep.subr.mxu0 0.0
      %510 = vmatpush1.msra.mxu0 0.0
      %511 = vmatprep.subr.mxu0 0.0
      %512 = vmatpush1.msra.mxu0 0.0
      %513 = vmatprep.subr.mxu0 0.0
      %514 = vmatpush1.msra.mxu0 0.0
      %515 = vmatprep.subr.mxu0 0.0
      %516 = vmatpush1.msra.mxu0 0.0
      %517 = vmatprep.subr.mxu0 0.0
      %518 = vmatpush1.msra.mxu0 0.0
      %519 = vmatprep.subr.mxu0 0.0
      %520 = vmatpush1.msra.mxu0 %v471
      %521 = vmatprep.subr.mxu0 0.0
      %522 = vmatpush1.msra.mxu0 %v466
      %523 = vmatprep.subr.mxu0 0.0
      %524 = vmatpush2.msra.mxu0 0.0
      %525 = vmatprep.subr.mxu0 0.0
      %526 = vmatpush2.msra.mxu0 0.0
      %527 = vmatprep.subr.mxu0 0.0
      %528 = vmatpush2.msra.mxu0 0.0
      %529 = vmatprep.subr.mxu0 0.0
      %530 = vmatpush2.msra.mxu0 0.0
      %531 = vmatprep.subr.mxu0 0.0
      %532 = vmatpush2.msra.mxu0 0.0
      %533 = vmatprep.subr.mxu0 0.0
      %534 = vmatpush2.msra.mxu0 0.0
      %535 = vmatprep.subr.mxu0 0.0
      %536 = vmatpush2.msra.mxu0 0.0
      %537 = vmatprep.subr.mxu0 0.0
      %538 = vmatpush2.msra.mxu0 0.0
      %539 = vmatprep.subr.mxu0 0.0
      %540 = vmatpush2.msra.mxu0 0.0
      %541 = vmatprep.subr.mxu0 0.0
      %542 = vmatpush2.msra.mxu0 0.0
      %543 = vmatprep.subr.mxu0 0.0
      %544 = vmatpush2.msra.mxu0 0.0
      %545 = vmatprep.subr.mxu0 0.0
      %546 = vmatpush2.msra.mxu0 0.0
      %547 = vmatprep.subr.mxu0 0.0
      %548 = vmatpush2.msra.mxu0 0.0
      %549 = vmatprep.subr.mxu0 0.0
      %550 = vmatpush2.msra.mxu0 0.0
      %551 = vmatprep.subr.mxu0 0.0
      %552 = vmatpush2.msra.mxu0 0.0
      %553 = vmatprep.subr.mxu0 0.0
      %554 = vmatpush2.msra.mxu0 0.0
      %555 = vmatprep.mubr.f32.mxu0 0.0
      %556 = vmatmul.mubr.f32.gmra.mxu0 %v480
      %v557 = vpop.f32.mrf.mxu0
      %v558 = vadd.f32 0.0, %v557
      %v559 = vpop.f32.mrf.mxu0
      %560 = vmatprep.mubr.f32.mxu0 0.0
      %561 = vmatmul.mubr.f32.gmra.mxu0 %v483
      %v562 = vpop.f32.mrf.mxu0
      %v563 = vadd.f32 0.0, %v562
      %v564 = vpop.f32.mrf.mxu0
      %565 = vmatprep.mubr.f32.mxu0 0.0
      %566 = vmatmul.mubr.f32.gmra.mxu0 %v486
      %v567 = vpop.f32.mrf.mxu0
      %v568 = vadd.f32 0.0, %v567
      %v569 = vpop.f32.mrf.mxu0
      %570 = vmatprep.mubr.f32.mxu0 0.0
      %571 = vmatmul.mubr.f32.gmra.mxu0 %v489
      %v572 = vpop.f32.mrf.mxu0
      %v573 = vadd.f32 0.0, %v572
      %v574 = vpop.f32.mrf.mxu0
      %575 = vdwg.mxu0
      %v576 = vsub.f32 0.0, %v558
      %v577 = vsub.f32 0.0, %v563
      %v578 = vsub.f32 0.0, %v568
      %v579 = vsub.f32 0.0, %v573
      %v580 = vmul.f32 %v576, 1.442695
      %v581 = vpow.pop %v580
      %v582 = vmul.f32 %v577, 1.442695
      %v583 = vpow.pop %v582
      %v584 = vmul.f32 %v578, 1.442695
      %v585 = vpow.pop %v584
      %v586 = vmul.f32 %v579, 1.442695
      %v587 = vpow.pop %v586
      %v588 = vadd.f32 %v581, 1.0
      %v589 = vadd.f32 %v583, 1.0
      %v590 = vadd.f32 %v585, 1.0
      %v591 = vadd.f32 %v587, 1.0
      %v592 = vrcp.pop %v588
      %v593 = vmul.f32 1.0, %v592
      %v594 = vrcp.pop %v589
      %v595 = vmul.f32 1.0, %v594
      %v596 = vrcp.pop %v590
      %v597 = vmul.f32 1.0, %v596
      %v598 = vrcp.pop %v591
      %v599 = vmul.f32 1.0, %v598
      %v600 = vld [vmem:[%s2] sm:$0xff]
      %v601 = vld [vmem:[%s2 + $0x8] sm:$0xff]
      %v602 = vld [vmem:[%s2 + $0x10] sm:$0xff]
      %v603 = vld [vmem:[%s2 + $0x18] sm:$0xff]
      %v604 = vld [vmem:[%s3] sm:$0xff]
      %v605 = vld [vmem:[%s3 + $0x8] sm:$0xff]
      %v606 = vld [vmem:[%s3 + $0x10] sm:$0xff]
      %v607 = vld [vmem:[%s3 + $0x18] sm:$0xff]
      %609 = vset.pattern.permute.xlu0 0
      %610 = vperm.xlu0 %609, %v604
      %v611 = vpop.permute.xlu0 %610
      %614 = vset.pattern.permute.xlu0 0
      %615 = vperm.xlu0 %614, %v605
      %v616 = vpop.permute.xlu0 %615
      %619 = vset.pattern.permute.xlu0 0
      %620 = vperm.xlu0 %619, %v606
      %v621 = vpop.permute.xlu0 %620
      %624 = vset.pattern.permute.xlu0 0
      %625 = vperm.xlu0 %624, %v607
      %v626 = vpop.permute.xlu0 %625
      %v629 = vsel %vm478, %v600, 0
      %v632 = vsel %vm478, %v601, 0
      %v635 = vsel %vm478, %v602, 0
      %v638 = vsel %vm478, %v603, 0
      %640 = vmatprep.subr.mxu0 0.0
      %641 = vmatpush1.msra.mxu0 0.0
      %642 = vmatprep.subr.mxu0 0.0
      %643 = vmatpush1.msra.mxu0 0.0
      %644 = vmatprep.subr.mxu0 0.0
      %645 = vmatpush1.msra.mxu0 0.0
      %646 = vmatprep.subr.mxu0 0.0
      %647 = vmatpush1.msra.mxu0 0.0
      %648 = vmatprep.subr.mxu0 0.0
      %649 = vmatpush1.msra.mxu0 0.0
      %650 = vmatprep.subr.mxu0 0.0
      %651 = vmatpush1.msra.mxu0 0.0
      %652 = vmatprep.subr.mxu0 0.0
      %653 = vmatpush1.msra.mxu0 0.0
      %654 = vmatprep.subr.mxu0 0.0
      %655 = vmatpush1.msra.mxu0 0.0
      %656 = vmatprep.subr.mxu0 0.0
      %657 = vmatpush1.msra.mxu0 0.0
      %658 = vmatprep.subr.mxu0 0.0
      %659 = vmatpush1.msra.mxu0 0.0
      %660 = vmatprep.subr.mxu0 0.0
      %661 = vmatpush1.msra.mxu0 0.0
      %662 = vmatprep.subr.mxu0 0.0
      %663 = vmatpush1.msra.mxu0 0.0
      %664 = vmatprep.subr.mxu0 0.0
      %665 = vmatpush1.msra.mxu0 0.0
      %666 = vmatprep.subr.mxu0 0.0
      %667 = vmatpush1.msra.mxu0 0.0
      %668 = vmatprep.subr.mxu0 0.0
      %669 = vmatpush1.msra.mxu0 %v387
      %670 = vmatprep.subr.mxu0 0.0
      %671 = vmatpush1.msra.mxu0 %v386
      %672 = vmatprep.subr.mxu0 0.0
      %673 = vmatpush2.msra.mxu0 0.0
      %674 = vmatprep.subr.mxu0 0.0
      %675 = vmatpush2.msra.mxu0 0.0
      %676 = vmatprep.subr.mxu0 0.0
      %677 = vmatpush2.msra.mxu0 0.0
      %678 = vmatprep.subr.mxu0 0.0
      %679 = vmatpush2.msra.mxu0 0.0
      %680 = vmatprep.subr.mxu0 0.0
      %681 = vmatpush2.msra.mxu0 0.0
      %682 = vmatprep.subr.mxu0 0.0
      %683 = vmatpush2.msra.mxu0 0.0
      %684 = vmatprep.subr.mxu0 0.0
      %685 = vmatpush2.msra.mxu0 0.0
      %686 = vmatprep.subr.mxu0 0.0
      %687 = vmatpush2.msra.mxu0 0.0
      %688 = vmatprep.subr.mxu0 0.0
      %689 = vmatpush2.msra.mxu0 0.0
      %690 = vmatprep.subr.mxu0 0.0
      %691 = vmatpush2.msra.mxu0 0.0
      %692 = vmatprep.subr.mxu0 0.0
      %693 = vmatpush2.msra.mxu0 0.0
      %694 = vmatprep.subr.mxu0 0.0
      %695 = vmatpush2.msra.mxu0 0.0
      %696 = vmatprep.subr.mxu0 0.0
      %697 = vmatpush2.msra.mxu0 0.0
      %698 = vmatprep.subr.mxu0 0.0
      %699 = vmatpush2.msra.mxu0 0.0
      %700 = vmatprep.subr.mxu0 0.0
      %701 = vmatpush2.msra.mxu0 0.0
      %702 = vmatprep.subr.mxu0 0.0
      %703 = vmatpush2.msra.mxu0 0.0
      %704 = vmatprep.mubr.f32.mxu0 0.0
      %705 = vmatmul.mubr.f32.gmra.mxu0 %v629
      %v706 = vpop.f32.mrf.mxu0
      %v707 = vadd.f32 %v611, %v706
      %v708 = vpop.f32.mrf.mxu0
      %709 = vmatprep.mubr.f32.mxu0 0.0
      %710 = vmatmul.mubr.f32.gmra.mxu0 %v632
      %v711 = vpop.f32.mrf.mxu0
      %v712 = vadd.f32 %v616, %v711
      %v713 = vpop.f32.mrf.mxu0
      %714 = vmatprep.mubr.f32.mxu0 0.0
      %715 = vmatmul.mubr.f32.gmra.mxu0 %v635
      %v716 = vpop.f32.mrf.mxu0
      %v717 = vadd.f32 %v621, %v716
      %v718 = vpop.f32.mrf.mxu0
      %719 = vmatprep.mubr.f32.mxu0 0.0
      %720 = vmatmul.mubr.f32.gmra.mxu0 %v638
      %v721 = vpop.f32.mrf.mxu0
      %v722 = vadd.f32 %v626, %v721
      %v723 = vpop.f32.mrf.mxu0
      %724 = vdwg.mxu0
      %v725 = vmax.f32 %v707, 0.0
      %v726 = vmax.f32 %v712, 0.0
      %v727 = vmax.f32 %v717, 0.0
      %v728 = vmax.f32 %v722, 0.0
      %730 = vset.pattern.permute.xlu0 0
      %731 = vperm.xlu0 %730, %v593
      %v732 = vpop.permute.xlu0 %731
      %735 = vset.pattern.permute.xlu0 0
      %736 = vperm.xlu0 %735, %v595
      %v737 = vpop.permute.xlu0 %736
      %740 = vset.pattern.permute.xlu0 0
      %741 = vperm.xlu0 %740, %v597
      %v742 = vpop.permute.xlu0 %741
      %745 = vset.pattern.permute.xlu0 0
      %746 = vperm.xlu0 %745, %v599
      %v747 = vpop.permute.xlu0 %746
      %v749 = vmul.f32 %v725, %v732
      %v750 = vmul.f32 %v726, %v737
      %v751 = vmul.f32 %v727, %v742
      %v752 = vmul.f32 %v728, %v747
      %v753 = vld [vmem:[%s5] sm:$0x3f]
      %v754 = vld [vmem:[%s6] sm:$0x3f]
      %756 = vset.pattern.permute.xlu0 0
      %757 = vperm.xlu0 %756, %v754
      %v758 = vpop.permute.xlu0 %757
      %vm760 = vcmask 261120
      %v762 = vsel %vm760, %v753, 0
      %764 = vmatprep.subr.mxu0 0.0
      %765 = vmatpush1.msra.mxu0 0.0
      %766 = vmatprep.subr.mxu0 0.0
      %767 = vmatpush1.msra.mxu0 0.0
      %768 = vmatprep.subr.mxu0 0.0
      %769 = vmatpush1.msra.mxu0 0.0
      %770 = vmatprep.subr.mxu0 0.0
      %771 = vmatpush1.msra.mxu0 0.0
      %772 = vmatprep.subr.mxu0 0.0
      %773 = vmatpush1.msra.mxu0 0.0
      %774 = vmatprep.subr.mxu0 0.0
      %775 = vmatpush1.msra.mxu0 0.0
      %776 = vmatprep.subr.mxu0 0.0
      %777 = vmatpush1.msra.mxu0 0.0
      %778 = vmatprep.subr.mxu0 0.0
      %779 = vmatpush1.msra.mxu0 0.0
      %780 = vmatprep.subr.mxu0 0.0
      %781 = vmatpush1.msra.mxu0 0.0
      %782 = vmatprep.subr.mxu0 0.0
      %783 = vmatpush1.msra.mxu0 0.0
      %784 = vmatprep.subr.mxu0 0.0
      %785 = vmatpush1.msra.mxu0 0.0
      %786 = vmatprep.subr.mxu0 0.0
      %787 = vmatpush1.msra.mxu0 0.0
      %788 = vmatprep.subr.mxu0 0.0
      %789 = vmatpush1.msra.mxu0 %v752
      %790 = vmatprep.subr.mxu0 0.0
      %791 = vmatpush1.msra.mxu0 %v751
      %792 = vmatprep.subr.mxu0 0.0
      %793 = vmatpush1.msra.mxu0 %v750
      %794 = vmatprep.subr.mxu0 0.0
      %795 = vmatpush1.msra.mxu0 %v749
      %796 = vmatprep.subr.mxu0 0.0
      %797 = vmatpush2.msra.mxu0 0.0
      %798 = vmatprep.subr.mxu0 0.0
      %799 = vmatpush2.msra.mxu0 0.0
      %800 = vmatprep.subr.mxu0 0.0
      %801 = vmatpush2.msra.mxu0 0.0
      %802 = vmatprep.subr.mxu0 0.0
      %803 = vmatpush2.msra.mxu0 0.0
      %804 = vmatprep.subr.mxu0 0.0
      %805 = vmatpush2.msra.mxu0 0.0
      %806 = vmatprep.subr.mxu0 0.0
      %807 = vmatpush2.msra.mxu0 0.0
      %808 = vmatprep.subr.mxu0 0.0
      %809 = vmatpush2.msra.mxu0 0.0
      %810 = vmatprep.subr.mxu0 0.0
      %811 = vmatpush2.msra.mxu0 0.0
      %812 = vmatprep.subr.mxu0 0.0
      %813 = vmatpush2.msra.mxu0 0.0
      %814 = vmatprep.subr.mxu0 0.0
      %815 = vmatpush2.msra.mxu0 0.0
      %816 = vmatprep.subr.mxu0 0.0
      %817 = vmatpush2.msra.mxu0 0.0
      %818 = vmatprep.subr.mxu0 0.0
      %819 = vmatpush2.msra.mxu0 0.0
      %820 = vmatprep.subr.mxu0 0.0
      %821 = vmatpush2.msra.mxu0 0.0
      %822 = vmatprep.subr.mxu0 0.0
      %823 = vmatpush2.msra.mxu0 0.0
      %824 = vmatprep.subr.mxu0 0.0
      %825 = vmatpush2.msra.mxu0 0.0
      %826 = vmatprep.subr.mxu0 0.0
      %827 = vmatpush2.msra.mxu0 0.0
      %828 = vmatprep.mubr.f32.mxu0 0.0
      %829 = vmatmul.mubr.f32.gmra.mxu0 %v762
      %v830 = vpop.f32.mrf.mxu0
      %v831 = vadd.f32 %v758, %v830
      %v832 = vpop.f32.mrf.mxu0
      %833 = vdwg.mxu0
      %vm834 = vcmask 29696
      %835 = vst.msk [vmem:[%s381] sm:$0x3f] %vm834, %v831
      %v836 = vld [vmem:[%s7] sm:$0x3f]
      %v837 = vld [vmem:[%s377] sm:$0xff]
      %v838 = vld [vmem:[%s8] sm:$0x3f]
      %840 = vset.pattern.permute.xlu0 0
      %841 = vperm.xlu0 %840, %v838
      %v842 = vpop.permute.xlu0 %841
      %vm844 = vcmask 64512
      %v846 = vsel %vm844, %v836, 0
      %848 = vmatprep.subr.mxu0 0.0
      %849 = vmatpush1.msra.mxu0 0.0
      %850 = vmatprep.subr.mxu0 0.0
      %851 = vmatpush1.msra.mxu0 0.0
      %852 = vmatprep.subr.mxu0 0.0
      %853 = vmatpush1.msra.mxu0 0.0
      %854 = vmatprep.subr.mxu0 0.0
      %855 = vmatpush1.msra.mxu0 0.0
      %856 = vmatprep.subr.mxu0 0.0
      %857 = vmatpush1.msra.mxu0 0.0
      %858 = vmatprep.subr.mxu0 0.0
      %859 = vmatpush1.msra.mxu0 0.0
      %860 = vmatprep.subr.mxu0 0.0
      %861 = vmatpush1.msra.mxu0 0.0
      %862 = vmatprep.subr.mxu0 0.0
      %863 = vmatpush1.msra.mxu0 0.0
      %864 = vmatprep.subr.mxu0 0.0
      %865 = vmatpush1.msra.mxu0 0.0
      %866 = vmatprep.subr.mxu0 0.0
      %867 = vmatpush1.msra.mxu0 0.0
      %868 = vmatprep.subr.mxu0 0.0
      %869 = vmatpush1.msra.mxu0 0.0
      %870 = vmatprep.subr.mxu0 0.0
      %871 = vmatpush1.msra.mxu0 0.0
      %872 = vmatprep.subr.mxu0 0.0
      %873 = vmatpush1.msra.mxu0 0.0
      %874 = vmatprep.subr.mxu0 0.0
      %875 = vmatpush1.msra.mxu0 0.0
      %876 = vmatprep.subr.mxu0 0.0
      %877 = vmatpush1.msra.mxu0 0.0
      %878 = vmatprep.subr.mxu0 0.0
      %879 = vmatpush1.msra.mxu0 %v837
      %880 = vmatprep.subr.mxu0 0.0
      %881 = vmatpush2.msra.mxu0 0.0
      %882 = vmatprep.subr.mxu0 0.0
      %883 = vmatpush2.msra.mxu0 0.0
      %884 = vmatprep.subr.mxu0 0.0
      %885 = vmatpush2.msra.mxu0 0.0
      %886 = vmatprep.subr.mxu0 0.0
      %887 = vmatpush2.msra.mxu0 0.0
      %888 = vmatprep.subr.mxu0 0.0
      %889 = vmatpush2.msra.mxu0 0.0
      %890 = vmatprep.subr.mxu0 0.0
      %891 = vmatpush2.msra.mxu0 0.0
      %892 = vmatprep.subr.mxu0 0.0
      %893 = vmatpush2.msra.mxu0 0.0
      %894 = vmatprep.subr.mxu0 0.0
      %895 = vmatpush2.msra.mxu0 0.0
      %896 = vmatprep.subr.mxu0 0.0
      %897 = vmatpush2.msra.mxu0 0.0
      %898 = vmatprep.subr.mxu0 0.0
      %899 = vmatpush2.msra.mxu0 0.0
      %900 = vmatprep.subr.mxu0 0.0
      %901 = vmatpush2.msra.mxu0 0.0
      %902 = vmatprep.subr.mxu0 0.0
      %903 = vmatpush2.msra.mxu0 0.0
      %904 = vmatprep.subr.mxu0 0.0
      %905 = vmatpush2.msra.mxu0 0.0
      %906 = vmatprep.subr.mxu0 0.0
      %907 = vmatpush2.msra.mxu0 0.0
      %908 = vmatprep.subr.mxu0 0.0
      %909 = vmatpush2.msra.mxu0 0.0
      %910 = vmatprep.subr.mxu0 0.0
      %911 = vmatpush2.msra.mxu0 0.0
      %912 = vmatprep.mubr.f32.mxu0 0.0
      %913 = vmatmul.mubr.f32.gmra.mxu0 %v846
      %v914 = vpop.f32.mrf.mxu0
      %v915 = vadd.f32 %v842, %v914
      %v916 = vpop.f32.mrf.mxu0
      %917 = vdwg.mxu0
      %vm918 = vcmask 128000
      %919 = vst.msk [vmem:[%s385] sm:$0x3f] %vm918, %v915
      %p920 = scmp.lt.s32.totalorder %s22, 1
      %s921 = scalar_select %p920, %s22, 1
      %s922 = smul.addr %s921, 8
      %s923 = scalar_lea.vmem %s9, %s922
      %p924 = scmp.lt.s32.totalorder %s22, 1
      %s925 = scalar_select %p924, %s22, 1
      %s926 = smul.addr %s925, 8
      %s927 = scalar_lea.vmem %s10, %s926
      // Predicated region
      $region57: #{lraspp_forward.3} parent=55 // pred_check
        %p928 = pneg %p239
      $region58: #{lraspp_forward.3} parent=55 // pred_check_branch
        %930 = sbr.rel (%p928) target = $region60
      $region59: #{lraspp_forward.3} parent=55 // pred_region
        _
      $region60: #{lraspp_forward.3} parent=55 // pred_fallthru
        _
      // Predicated region
      $region61: #{lraspp_forward.3} parent=55 // pred_check
        %p931 = pneg %p265
      $region62: #{lraspp_forward.3} parent=55 // pred_check_branch
        %933 = sbr.rel (%p931) target = $region64
      $region63: #{lraspp_forward.3} parent=55 // pred_region
        _
      $region64: #{lraspp_forward.3} parent=55 // pred_fallthru
        _
    $region56: #{lraspp_forward.3} parent=5 // pred_fallthru
      _
    %p934 = scmp.le.s32.totalorder 2, %s17
    // Predicated region
    $region65: #{lraspp_forward.3} parent=5 // pred_check
      %p935 = pneg %p934
    $region66: #{lraspp_forward.3} parent=5 // pred_check_branch
      %937 = sbr.rel (%p935) target = $region68
    $region67: #{lraspp_forward.3} parent=5 // pred_region
      %s938 = ssub.s32 %s17, 2
      // Predicated region
      $region69: #{lraspp_forward.3} parent=67 // pred_check
        %p939 = pneg %p245
      $region70: #{lraspp_forward.3} parent=67 // pred_check_branch
        %941 = sbr.rel (%p939) target = $region72
      $region71: #{lraspp_forward.3} parent=67 // pred_region
        %p942 = scmp.lt.s32.totalorder %s23, 1
        %s943 = scalar_select %p942, %s23, 1
        %s944 = smul.addr %s943, 8
        %s945 = scalar_lea.vmem %s9, %s944
      $region72: #{lraspp_forward.3} parent=67 // pred_fallthru
        _
      // Predicated region
      $region73: #{lraspp_forward.3} parent=67 // pred_check
        %p946 = pneg %p271
      $region74: #{lraspp_forward.3} parent=67 // pred_check_branch
        %948 = sbr.rel (%p946) target = $region76
      $region75: #{lraspp_forward.3} parent=67 // pred_region
        %p949 = scmp.lt.s32.totalorder %s23, 1
        %s950 = scalar_select %p949, %s23, 1
        %s951 = smul.addr %s950, 8
        %s952 = scalar_lea.vmem %s10, %s951
      $region76: #{lraspp_forward.3} parent=67 // pred_fallthru
        _
    $region68: #{lraspp_forward.3} parent=5 // pred_fallthru
      _
  $region6: #{lraspp_forward.3} parent=0 // loop_footer
    %s21 = sadd.s32 1, %s17
  $region7: #{lraspp_forward.3} parent=0 // loop_footer_branch
    %16 = sbr.rel target = $region3
  $region8: #{lraspp_forward.3} parent=0 // loop_exit
    _

</llo_original>
